<compile_context>
chip_gen: v5e
topology: v5e:2x2
jax: 0.10.0
libtpu: 0.0.40
codegen_flags: <defaults>
</compile_context>

<pallas_src>
import jax
import jax.numpy as jnp
from jax.experimental import pallas as pl
from jax.experimental.pallas import tpu as pltpu

EPS = 1e-5


def bottleneck_kernel(x_ref, g1_ref, b1_ref, w1_ref, g2_ref, b2_ref, w2_ref,
                      out_ref, pad_ref):
    """Fused Bottleneck body (everything except the final channel concat).

    x_ref   : (N, H, W, C)        f32   input activations (NHWC, C on lanes)
    g1/b1   : (1, C)              f32   bn1 affine params
    w1_ref  : (C, interC)         bf16  1x1 conv weight
    g2/b2   : (1, interC)         f32   bn2 affine params
    w2_ref  : (9*interC, Gpad)    bf16  3x3 conv weight, im2col-flattened,
                                        zero-padded to Gpad = round_up(G,128)
    out_ref : (N*H*W, Gpad)       f32   conv2 output, lane-dense slab
    pad_ref : (N, H+2, W+2, interC) f32 scratch (zero halo for the 3x3 conv)
    """
    N, H, W, C = x_ref.shape
    interC = w1_ref.shape[1]

    xf = x_ref[...].reshape(N * H * W, C)

    # ---- bn1 (training-mode batch stats, single reduction pass) + relu ----
    mean1 = jnp.mean(xf, axis=0, keepdims=True)
    var1 = jnp.mean(xf * xf, axis=0, keepdims=True) - mean1 * mean1
    scale1 = g1_ref[...] * jax.lax.rsqrt(var1 + EPS)
    shift1 = b1_ref[...] - mean1 * scale1
    h1 = jnp.maximum(xf * scale1 + shift1, 0.0)

    # ---- conv1: 1x1 conv == channel matmul on the MXU (bf16 in, f32 acc) ----
    h2 = jnp.dot(h1.astype(jnp.bfloat16), w1_ref[...],
                 preferred_element_type=jnp.float32)            # (NHW, interC)

    # ---- bn2 (single pass) + relu ----
    mean2 = jnp.mean(h2, axis=0, keepdims=True)
    var2 = jnp.mean(h2 * h2, axis=0, keepdims=True) - mean2 * mean2
    scale2 = g2_ref[...] * jax.lax.rsqrt(var2 + EPS)
    shift2 = b2_ref[...] - mean2 * scale2
    h2 = jnp.maximum(h2 * scale2 + shift2, 0.0)

    # ---- conv2: 3x3 pad=1 via im2col + one K=9*interC matmul ----
    # Zero only the 1-pixel halo of the scratch, then write the interior.
    zrow = jnp.zeros((N, 1, W + 2, interC), jnp.float32)
    zcol = jnp.zeros((N, H, 1, interC), jnp.float32)
    pad_ref[:, 0:1, :, :] = zrow
    pad_ref[:, H + 1:H + 2, :, :] = zrow
    pad_ref[:, 1:H + 1, 0:1, :] = zcol
    pad_ref[:, 1:H + 1, W + 1:W + 2, :] = zcol
    pad_ref[:, 1:H + 1, 1:W + 1, :] = h2.reshape(N, H, W, interC)

    # 9 shifted taps concatenated along channels -> (NHW, 9*interC) operand.
    taps = [pad_ref[:, dy:dy + H, dx:dx + W, :]
            for dy in range(3) for dx in range(3)]               # trace-time unroll
    patch = jnp.concatenate(taps, axis=-1).reshape(N * H * W, 9 * interC)
    out_ref[...] = jnp.dot(patch.astype(jnp.bfloat16), w2_ref[...],
                           preferred_element_type=jnp.float32)   # lane-dense store


def _round_up(x, m):
    return (x + m - 1) // m * m


def prepare_params(g1, b1, w1_oihw, g2, b2, w2_oihw):
    """Convert PyTorch-shaped parameters to the kernel layout."""
    interC, C = int(w1_oihw.shape[0]), int(w1_oihw.shape[1])
    G = int(w2_oihw.shape[0])
    Gpad = _round_up(G, 128)                                  # lane-dense output
    w1 = jnp.transpose(w1_oihw[:, :, 0, 0], (1, 0)).astype(jnp.bfloat16)   # (C, interC)
    w2 = jnp.transpose(w2_oihw, (2, 3, 1, 0)).reshape(9 * interC, G)       # (kh,kw,ci)->rows
    w2f = jnp.zeros((9 * interC, Gpad), jnp.float32).at[:, :G].set(w2)
    return {
        "g1": g1.reshape(1, C).astype(jnp.float32),
        "b1": b1.reshape(1, C).astype(jnp.float32),
        "w1": w1,
        "g2": g2.reshape(1, interC).astype(jnp.float32),
        "b2": b2.reshape(1, interC).astype(jnp.float32),
        "w2f": w2f.astype(jnp.bfloat16),
        "G": G,
    }


def bottleneck_forward(x_nchw, params):
    """x_nchw: (N, C, H, W) float32; returns (N, C + growthRate, H, W) float32."""
    N, C, H, W = x_nchw.shape
    w1, w2f, G = params["w1"], params["w2f"], params["G"]
    interC = w1.shape[1]
    Gpad = w2f.shape[1]

    # Kernel works NHWC (channels on the lane axis).
    x = jnp.transpose(x_nchw, (0, 2, 3, 1))

    # Explicit VMEM budget (x, pad scratch, intermediates, im2col patch, out),
    # clamped so the request also fits v7x's 64 MiB physical VMEM.
    est = 4 * (N * H * W * (C + 4 * interC + Gpad)
               + N * (H + 2) * (W + 2) * interC
               + N * H * W * 9 * interC)
    vmem_limit = int(min(max(2 * est, 8 << 20), 48 << 20))

    vmem = pl.BlockSpec(memory_space=pltpu.MemorySpace.VMEM)
    out2d = pl.pallas_call(
        bottleneck_kernel,
        out_shape=jax.ShapeDtypeStruct((N * H * W, Gpad), jnp.float32),
        in_specs=[vmem] * 7,
        out_specs=vmem,
        scratch_shapes=[pltpu.VMEM((N, H + 2, W + 2, interC), jnp.float32)],
        compiler_params=pltpu.CompilerParams(vmem_limit_bytes=vmem_limit),
    )(x, params["g1"], params["b1"], w1, params["g2"], params["b2"], w2f)

    # concat(x, conv2_out) happens outside the kernel: no passthrough copy of
    # x through the kernel's store path, only the G real channels are kept.
    y_nchw = jnp.transpose(out2d[:, :G].reshape(N, H, W, G), (0, 3, 1, 2))
    return jnp.concatenate([x_nchw, y_nchw], axis=1)


def reference_forward(x_nchw, g1, b1, w1_oihw, g2, b2, w2_oihw):
    """Pure-JAX reference matching the PyTorch forward (training-mode BN)."""
    def bn(x, g, b):
        mean = jnp.mean(x, axis=(0, 2, 3), keepdims=True)
        var = jnp.var(x, axis=(0, 2, 3), keepdims=True)     # biased, like PyTorch
        return ((x - mean) * jax.lax.rsqrt(var + EPS)
                * g.reshape(1, -1, 1, 1) + b.reshape(1, -1, 1, 1))

    h = jax.nn.relu(bn(x_nchw, g1, b1))
    h = jax.lax.conv_general_dilated(
        h, w1_oihw, (1, 1), "VALID",
        dimension_numbers=("NCHW", "OIHW", "NCHW"))
    h = jax.nn.relu(bn(h, g2, b2))
    h = jax.lax.conv_general_dilated(
        h, w2_oihw, (1, 1), ((1, 1), (1, 1)),
        dimension_numbers=("NCHW", "OIHW", "NCHW"))
    return jnp.concatenate([x_nchw, h], axis=1)


if __name__ == "__main__":
    # Small, deterministic setup: Bottleneck(nChannels=16, growthRate=8)
    N, C, H, W = 2, 16, 8, 8
    growthRate = 8
    interC = 4 * growthRate                                   # 32

    key = jax.random.PRNGKey(0)
    kx, k1, k2, k3, k4, k5, k6 = jax.random.split(key, 7)

    x = jax.random.normal(kx, (N, C, H, W), dtype=jnp.float32)

    # PyTorch-shaped parameters (deterministic synthetic init).
    g1 = 1.0 + 0.1 * jax.random.normal(k1, (C,), dtype=jnp.float32)
    b1 = 0.1 * jax.random.normal(k2, (C,), dtype=jnp.float32)
    w1_oihw = (jax.random.normal(k3, (interC, C, 1, 1), dtype=jnp.float32)
               / jnp.sqrt(C))
    g2 = 1.0 + 0.1 * jax.random.normal(k4, (interC,), dtype=jnp.float32)
    b2 = 0.1 * jax.random.normal(k5, (interC,), dtype=jnp.float32)
    w2_oihw = (jax.random.normal(k6, (growthRate, interC, 3, 3), dtype=jnp.float32)
               / jnp.sqrt(9 * interC))

    params = prepare_params(g1, b1, w1_oihw, g2, b2, w2_oihw)

    out = jax.block_until_ready(bottleneck_forward(x, params))
    ref = jax.block_until_ready(
        reference_forward(x, g1, b1, w1_oihw, g2, b2, w2_oihw))

    assert out.shape == (N, C + growthRate, H, W), out.shape
    assert bool(jnp.all(jnp.isfinite(out)))
    max_err = float(jnp.max(jnp.abs(out - ref)))
    assert bool(jnp.allclose(out, ref, rtol=5e-2, atol=5e-2)), max_err

    print("KERNEL_OK")
</pallas_src>

<mosaic_0001>
module attributes {stable_mosaic.version = 11 : i64} {
  func.func @bottleneck_kernel(%arg0: memref<2x8x8x16xf32, #tpu.memory_space<vmem>>, %arg1: memref<1x16xf32, #tpu.memory_space<vmem>>, %arg2: memref<1x16xf32, #tpu.memory_space<vmem>>, %arg3: memref<16x32xbf16, #tpu.memory_space<vmem>>, %arg4: memref<1x32xf32, #tpu.memory_space<vmem>>, %arg5: memref<1x32xf32, #tpu.memory_space<vmem>>, %arg6: memref<288x128xbf16, #tpu.memory_space<vmem>>, %arg7: memref<128x128xf32, #tpu.memory_space<vmem>>, %arg8: memref<2x10x10x32xf32, #tpu.memory_space<vmem>>) attributes {dimension_semantics = [], scalar_prefetch = 0 : i64, scratch_operands = 1 : i64, tpu.core_type = #tpu.core_type<tc>} {
    %c0 = arith.constant 0 : index
    %c0_0 = arith.constant 0 : index
    %c0_1 = arith.constant 0 : index
    %c0_2 = arith.constant 0 : index
    %0 = vector.load %arg0[%c0, %c0_0, %c0_1, %c0_2] : memref<2x8x8x16xf32, #tpu.memory_space<vmem>>, vector<2x8x8x16xf32>
    %1 = vector.shape_cast %0 : vector<2x8x8x16xf32> to vector<128x16xf32>
    %cst = arith.constant dense<0.000000e+00> : vector<16xf32>
    %2 = vector.multi_reduction <add>, %1, %cst [0] : vector<128x16xf32> to vector<16xf32>
    %3 = vector.shape_cast %2 : vector<16xf32> to vector<1x16xf32>
    %cst_3 = arith.constant 1.280000e+02 : f32
    %4 = vector.broadcast %cst_3 : f32 to vector<1x16xf32>
    %5 = arith.divf %3, %4 : vector<1x16xf32>
    %6 = arith.mulf %1, %1 : vector<128x16xf32>
    %cst_4 = arith.constant dense<0.000000e+00> : vector<16xf32>
    %7 = vector.multi_reduction <add>, %6, %cst_4 [0] : vector<128x16xf32> to vector<16xf32>
    %8 = vector.shape_cast %7 : vector<16xf32> to vector<1x16xf32>
    %cst_5 = arith.constant 1.280000e+02 : f32
    %9 = vector.broadcast %cst_5 : f32 to vector<1x16xf32>
    %10 = arith.divf %8, %9 : vector<1x16xf32>
    %11 = arith.mulf %5, %5 : vector<1x16xf32>
    %12 = arith.subf %10, %11 : vector<1x16xf32>
    %c0_6 = arith.constant 0 : index
    %c0_7 = arith.constant 0 : index
    %13 = vector.load %arg1[%c0_6, %c0_7] : memref<1x16xf32, #tpu.memory_space<vmem>>, vector<1x16xf32>
    %cst_8 = arith.constant 9.99999974E-6 : f32
    %14 = vector.broadcast %cst_8 : f32 to vector<1x16xf32>
    %15 = arith.addf %12, %14 : vector<1x16xf32>
    %16 = math.rsqrt %15 : vector<1x16xf32>
    %17 = arith.mulf %13, %16 : vector<1x16xf32>
    %c0_9 = arith.constant 0 : index
    %c0_10 = arith.constant 0 : index
    %18 = vector.load %arg2[%c0_9, %c0_10] : memref<1x16xf32, #tpu.memory_space<vmem>>, vector<1x16xf32>
    %19 = arith.mulf %5, %17 : vector<1x16xf32>
    %20 = arith.subf %18, %19 : vector<1x16xf32>
    %21 = vector.broadcast %17 : vector<1x16xf32> to vector<128x16xf32>
    %22 = arith.mulf %1, %21 : vector<128x16xf32>
    %23 = vector.broadcast %20 : vector<1x16xf32> to vector<128x16xf32>
    %24 = arith.addf %22, %23 : vector<128x16xf32>
    %cst_11 = arith.constant 0.000000e+00 : f32
    %25 = vector.broadcast %cst_11 : f32 to vector<128x16xf32>
    %26 = arith.maximumf %24, %25 : vector<128x16xf32>
    %27 = arith.truncf %26 : vector<128x16xf32> to vector<128x16xbf16>
    %c0_12 = arith.constant 0 : index
    %c0_13 = arith.constant 0 : index
    %28 = vector.load %arg3[%c0_12, %c0_13] : memref<16x32xbf16, #tpu.memory_space<vmem>>, vector<16x32xbf16>
    %cst_14 = arith.constant dense<0.000000e+00> : vector<128x32xf32>
    %29 = tpu.matmul %27, %28, %cst_14 {dimension_numbers = #tpu.dot_dimension_numbers<[1], [0], [0], [1], [0, 0, 1, 1], [], []>} : vector<128x16xbf16>, vector<16x32xbf16>, vector<128x32xf32> -> vector<128x32xf32>
    %cst_15 = arith.constant dense<0.000000e+00> : vector<32xf32>
    %30 = vector.multi_reduction <add>, %29, %cst_15 [0] : vector<128x32xf32> to vector<32xf32>
    %31 = vector.shape_cast %30 : vector<32xf32> to vector<1x32xf32>
    %cst_16 = arith.constant 1.280000e+02 : f32
    %32 = vector.broadcast %cst_16 : f32 to vector<1x32xf32>
    %33 = arith.divf %31, %32 : vector<1x32xf32>
    %34 = arith.mulf %29, %29 : vector<128x32xf32>
    %cst_17 = arith.constant dense<0.000000e+00> : vector<32xf32>
    %35 = vector.multi_reduction <add>, %34, %cst_17 [0] : vector<128x32xf32> to vector<32xf32>
    %36 = vector.shape_cast %35 : vector<32xf32> to vector<1x32xf32>
    %cst_18 = arith.constant 1.280000e+02 : f32
    %37 = vector.broadcast %cst_18 : f32 to vector<1x32xf32>
    %38 = arith.divf %36, %37 : vector<1x32xf32>
    %39 = arith.mulf %33, %33 : vector<1x32xf32>
    %40 = arith.subf %38, %39 : vector<1x32xf32>
    %c0_19 = arith.constant 0 : index
    %c0_20 = arith.constant 0 : index
    %41 = vector.load %arg4[%c0_19, %c0_20] : memref<1x32xf32, #tpu.memory_space<vmem>>, vector<1x32xf32>
    %cst_21 = arith.constant 9.99999974E-6 : f32
    %42 = vector.broadcast %cst_21 : f32 to vector<1x32xf32>
    %43 = arith.addf %40, %42 : vector<1x32xf32>
    %44 = math.rsqrt %43 : vector<1x32xf32>
    %45 = arith.mulf %41, %44 : vector<1x32xf32>
    %c0_22 = arith.constant 0 : index
    %c0_23 = arith.constant 0 : index
    %46 = vector.load %arg5[%c0_22, %c0_23] : memref<1x32xf32, #tpu.memory_space<vmem>>, vector<1x32xf32>
    %47 = arith.mulf %33, %45 : vector<1x32xf32>
    %48 = arith.subf %46, %47 : vector<1x32xf32>
    %49 = vector.broadcast %45 : vector<1x32xf32> to vector<128x32xf32>
    %50 = arith.mulf %29, %49 : vector<128x32xf32>
    %51 = vector.broadcast %48 : vector<1x32xf32> to vector<128x32xf32>
    %52 = arith.addf %50, %51 : vector<128x32xf32>
    %cst_24 = arith.constant 0.000000e+00 : f32
    %53 = vector.broadcast %cst_24 : f32 to vector<128x32xf32>
    %54 = arith.maximumf %52, %53 : vector<128x32xf32>
    %cst_25 = arith.constant 0.000000e+00 : f32
    %55 = vector.broadcast %cst_25 : f32 to vector<2x1x10x32xf32>
    %cst_26 = arith.constant 0.000000e+00 : f32
    %56 = vector.broadcast %cst_26 : f32 to vector<2x8x1x32xf32>
    %c0_27 = arith.constant 0 : index
    %c0_28 = arith.constant 0 : index
    %c0_29 = arith.constant 0 : index
    %c0_30 = arith.constant 0 : index
    %57 = vector.load %arg8[%c0_27, %c0_28, %c0_29, %c0_30] : memref<2x10x10x32xf32, #tpu.memory_space<vmem>>, vector<2x1x10x32xf32>
    tpu.vector_store %arg8[%c0_27, %c0_28, %c0_29, %c0_30], %55 {strides = array<i32>} : memref<2x10x10x32xf32, #tpu.memory_space<vmem>>, vector<2x1x10x32xf32>,
    %c0_31 = arith.constant 0 : index
    %c9 = arith.constant 9 : index
    %c0_32 = arith.constant 0 : index
    %c0_33 = arith.constant 0 : index
    %58 = vector.load %arg8[%c0_31, %c9, %c0_32, %c0_33] : memref<2x10x10x32xf32, #tpu.memory_space<vmem>>, vector<2x1x10x32xf32>
    tpu.vector_store %arg8[%c0_31, %c9, %c0_32, %c0_33], %55 {strides = array<i32>} : memref<2x10x10x32xf32, #tpu.memory_space<vmem>>, vector<2x1x10x32xf32>,
    %c0_34 = arith.constant 0 : index
    %c1 = arith.constant 1 : index
    %c0_35 = arith.constant 0 : index
    %c0_36 = arith.constant 0 : index
    %59 = vector.load %arg8[%c0_34, %c1, %c0_35, %c0_36] : memref<2x10x10x32xf32, #tpu.memory_space<vmem>>, vector<2x8x1x32xf32>
    tpu.vector_store %arg8[%c0_34, %c1, %c0_35, %c0_36], %56 {strides = array<i32>} : memref<2x10x10x32xf32, #tpu.memory_space<vmem>>, vector<2x8x1x32xf32>,
    %c0_37 = arith.constant 0 : index
    %c1_38 = arith.constant 1 : index
    %c9_39 = arith.constant 9 : index
    %c0_40 = arith.constant 0 : index
    %60 = vector.load %arg8[%c0_37, %c1_38, %c9_39, %c0_40] : memref<2x10x10x32xf32, #tpu.memory_space<vmem>>, vector<2x8x1x32xf32>
    tpu.vector_store %arg8[%c0_37, %c1_38, %c9_39, %c0_40], %56 {strides = array<i32>} : memref<2x10x10x32xf32, #tpu.memory_space<vmem>>, vector<2x8x1x32xf32>,
    %61 = vector.shape_cast %54 : vector<128x32xf32> to vector<2x8x8x32xf32>
    %c0_41 = arith.constant 0 : index
    %c1_42 = arith.constant 1 : index
    %c1_43 = arith.constant 1 : index
    %c0_44 = arith.constant 0 : index
    %62 = vector.load %arg8[%c0_41, %c1_42, %c1_43, %c0_44] : memref<2x10x10x32xf32, #tpu.memory_space<vmem>>, vector<2x8x8x32xf32>
    tpu.vector_store %arg8[%c0_41, %c1_42, %c1_43, %c0_44], %61 {strides = array<i32>} : memref<2x10x10x32xf32, #tpu.memory_space<vmem>>, vector<2x8x8x32xf32>,
    %c0_45 = arith.constant 0 : index
    %c0_46 = arith.constant 0 : index
    %c0_47 = arith.constant 0 : index
    %c0_48 = arith.constant 0 : index
    %63 = vector.load %arg8[%c0_45, %c0_46, %c0_47, %c0_48] : memref<2x10x10x32xf32, #tpu.memory_space<vmem>>, vector<2x8x8x32xf32>
    %c0_49 = arith.constant 0 : index
    %c0_50 = arith.constant 0 : index
    %c1_51 = arith.constant 1 : index
    %c0_52 = arith.constant 0 : index
    %64 = vector.load %arg8[%c0_49, %c0_50, %c1_51, %c0_52] : memref<2x10x10x32xf32, #tpu.memory_space<vmem>>, vector<2x8x8x32xf32>
    %c0_53 = arith.constant 0 : index
    %c0_54 = arith.constant 0 : index
    %c2 = arith.constant 2 : index
    %c0_55 = arith.constant 0 : index
    %65 = vector.load %arg8[%c0_53, %c0_54, %c2, %c0_55] : memref<2x10x10x32xf32, #tpu.memory_space<vmem>>, vector<2x8x8x32xf32>
    %c0_56 = arith.constant 0 : index
    %c1_57 = arith.constant 1 : index
    %c0_58 = arith.constant 0 : index
    %c0_59 = arith.constant 0 : index
    %66 = vector.load %arg8[%c0_56, %c1_57, %c0_58, %c0_59] : memref<2x10x10x32xf32, #tpu.memory_space<vmem>>, vector<2x8x8x32xf32>
    %c0_60 = arith.constant 0 : index
    %c1_61 = arith.constant 1 : index
    %c1_62 = arith.constant 1 : index
    %c0_63 = arith.constant 0 : index
    %67 = vector.load %arg8[%c0_60, %c1_61, %c1_62, %c0_63] : memref<2x10x10x32xf32, #tpu.memory_space<vmem>>, vector<2x8x8x32xf32>
    %c0_64 = arith.constant 0 : index
    %c1_65 = arith.constant 1 : index
    %c2_66 = arith.constant 2 : index
    %c0_67 = arith.constant 0 : index
    %68 = vector.load %arg8[%c0_64, %c1_65, %c2_66, %c0_67] : memref<2x10x10x32xf32, #tpu.memory_space<vmem>>, vector<2x8x8x32xf32>
    %c0_68 = arith.constant 0 : index
    %c2_69 = arith.constant 2 : index
    %c0_70 = arith.constant 0 : index
    %c0_71 = arith.constant 0 : index
    %69 = vector.load %arg8[%c0_68, %c2_69, %c0_70, %c0_71] : memref<2x10x10x32xf32, #tpu.memory_space<vmem>>, vector<2x8x8x32xf32>
    %c0_72 = arith.constant 0 : index
    %c2_73 = arith.constant 2 : index
    %c1_74 = arith.constant 1 : index
    %c0_75 = arith.constant 0 : index
    %70 = vector.load %arg8[%c0_72, %c2_73, %c1_74, %c0_75] : memref<2x10x10x32xf32, #tpu.memory_space<vmem>>, vector<2x8x8x32xf32>
    %c0_76 = arith.constant 0 : index
    %c2_77 = arith.constant 2 : index
    %c2_78 = arith.constant 2 : index
    %c0_79 = arith.constant 0 : index
    %71 = vector.load %arg8[%c0_76, %c2_77, %c2_78, %c0_79] : memref<2x10x10x32xf32, #tpu.memory_space<vmem>>, vector<2x8x8x32xf32>
    %72 = tpu.concatenate %63, %64, %65, %66, %67, %68, %69, %70, %71 in 3 : vector<2x8x8x32xf32>, vector<2x8x8x32xf32>, vector<2x8x8x32xf32>, vector<2x8x8x32xf32>, vector<2x8x8x32xf32>, vector<2x8x8x32xf32>, vector<2x8x8x32xf32>, vector<2x8x8x32xf32>, vector<2x8x8x32xf32> -> vector<2x8x8x288xf32>
    %73 = vector.shape_cast %72 : vector<2x8x8x288xf32> to vector<128x288xf32>
    %74 = arith.truncf %73 : vector<128x288xf32> to vector<128x288xbf16>
    %c0_80 = arith.constant 0 : index
    %c0_81 = arith.constant 0 : index
    %75 = vector.load %arg6[%c0_80, %c0_81] : memref<288x128xbf16, #tpu.memory_space<vmem>>, vector<288x128xbf16>
    %cst_82 = arith.constant dense<0.000000e+00> : vector<128x128xf32>
    %76 = tpu.matmul %74, %75, %cst_82 {dimension_numbers = #tpu.dot_dimension_numbers<[1], [0], [0], [1], [0, 0, 1, 1], [], []>} : vector<128x288xbf16>, vector<288x128xbf16>, vector<128x128xf32> -> vector<128x128xf32>
    %c0_83 = arith.constant 0 : index
    %c0_84 = arith.constant 0 : index
    %77 = vector.load %arg7[%c0_83, %c0_84] : memref<128x128xf32, #tpu.memory_space<vmem>>, vector<128x128xf32>
    tpu.vector_store %arg7[%c0_83, %c0_84], %76 {strides = array<i32>} : memref<128x128xf32, #tpu.memory_space<vmem>>, vector<128x128xf32>,
    return
  }
}

</mosaic_0001>

<llo_original>
// kernel: tpu_custom_call.1
$region0: #{tpu_custom_call.1}
  #allocation0 [shape = 'u32[]', space=smem, size = 0x4, offset = 0x4, fixed_abs, tag = 'smem constant byte address 0x4 - core index']
  #allocation1 [shape = 'u32[72,128]{1,0:T(1,128)}', space=vmem, size = 0x9000, scoped, tag = 'internal scratch']
  #allocation2 [shape = 'f32[2,10,10,32]{3,2,1,0:T(8,128)}', space=vmem, size = 0x28000, scoped, tag = 'scratch operand']
  %s0 = inlined_call_operand.hbm [shape: f32[2,8,8,16], index: 0, kind: input, shape index: {}]
  %s1 = inlined_call_operand.hbm [shape: f32[1,16], index: 1, kind: input, shape index: {}]
  %s2 = inlined_call_operand.vmem [shape: f32[1,16], index: 2, kind: input, shape index: {}]
  %s3 = inlined_call_operand.hbm [shape: bf16[16,32], index: 3, kind: input, shape index: {}]
  %s4 = inlined_call_operand.vmem [shape: f32[1,32], index: 4, kind: input, shape index: {}]
  %s5 = inlined_call_operand.vmem [shape: f32[1,32], index: 5, kind: input, shape index: {}]
  %s6 = inlined_call_operand.hbm [shape: bf16[288,128], index: 6, kind: input, shape index: {}]
  %s7 = inlined_call_operand.hbm [shape: f32[128,128], index: 7, kind: output, shape index: {}]
  %s8 = sld [smem:[#allocation0]]
  $region54: #{tpu_custom_call.1} parent=0
    _
  %s10 = ssub.s32 1, %s8
  %s11 = scalar_select 0, %s10, %s8
  $region1: #{tpu_custom_call.1} parent=0
    #allocation3 [shape = 'u8[65536]{0}', space=vmem, size = 0x10000, scoped, tag = 'input window, operand 0, single buffered']
    #allocation4 [shape = 's32[1]{0}', space=sflag, size = 0x4, scoped, tag = 'scoped memory for tpu_custom_call.1']
    #allocation5 [shape = 's32[1]{0}', space=sflag, size = 0x4, scoped, tag = 'scoped memory for tpu_custom_call.1']
    #allocation6 [shape = 'u8[512]{0}', space=vmem, size = 0x400, scoped, tag = 'input window, operand 1, single buffered']
    #allocation7 [shape = 's32[1]{0}', space=sflag, size = 0x4, scoped, tag = 'scoped memory for tpu_custom_call.1']
    #allocation8 [shape = 'u8[4096]{0}', space=vmem, size = 0x1000, scoped, tag = 'input window, operand 3, single buffered']
    #allocation9 [shape = 'u8[73728]{0}', space=vmem, size = 0x12000, scoped, tag = 'input window, operand 6, single buffered']
    #allocation10 [shape = 's32[1]{0}', space=sflag, size = 0x4, scoped, tag = 'scoped memory for tpu_custom_call.1']
    #allocation11 [shape = 'u8[65536]{0}', space=vmem, size = 0x10000, scoped, tag = 'output window, operand 0, single buffered']
    %12 = vsyncpa [#allocation4], 0
    %13 = vsyncpa [#allocation7], 0
    %14 = vsyncpa [#allocation10], 0
    %15 = vsyncpa [#allocation5], 0
    // Predicated region
    $region2: #{tpu_custom_call.1} parent=1 // pred_check
      _
    $region3: #{tpu_custom_call.1} parent=1 // pred_check_branch
      %17 = sbr.rel (0) target = $region5
    $region4: #{tpu_custom_call.1} parent=1 // pred_region
      %19 = vsyncadd [#allocation4], 0
      %s20 = sshll.u32 %s0, 4
      %s21 = int_to_ptr.hbm [resolvable:$true] %s20
      %s22 = sshll.u32 [#allocation3], 4
      %s23 = int_to_ptr.vmem [resolvable:$true] %s22
      %28 = dma.hbm_to_vmem [thread:$0]  %s21, 2048, %s23, [#allocation4], 128, 128, 8
    $region5: #{tpu_custom_call.1} parent=1 // pred_fallthru
      _
    // Predicated region
    $region6: #{tpu_custom_call.1} parent=1 // pred_check
      _
    $region7: #{tpu_custom_call.1} parent=1 // pred_check_branch
      %30 = sbr.rel (0) target = $region9
    $region8: #{tpu_custom_call.1} parent=1 // pred_region
      %32 = vsyncadd [#allocation7], 0
      %s34 = sshll.u32 %s1, 4
      %s35 = int_to_ptr.hbm [resolvable:$true] %s34
      %s36 = sshll.u32 [#allocation6], 4
      %s37 = int_to_ptr.vmem [resolvable:$true] %s36
      %39 = dma.hbm_to_vmem [thread:$0]  %s35, 16, %s37, [#allocation7]
    $region9: #{tpu_custom_call.1} parent=1 // pred_fallthru
      _
    // Predicated region
    $region10: #{tpu_custom_call.1} parent=1 // pred_check
      _
    $region11: #{tpu_custom_call.1} parent=1 // pred_check_branch
      %41 = sbr.rel (0) target = $region13
    $region12: #{tpu_custom_call.1} parent=1 // pred_region
      _
    $region13: #{tpu_custom_call.1} parent=1 // pred_fallthru
      _
    // Predicated region
    $region14: #{tpu_custom_call.1} parent=1 // pred_check
      _
    $region15: #{tpu_custom_call.1} parent=1 // pred_check_branch
      %43 = sbr.rel (0) target = $region17
    $region16: #{tpu_custom_call.1} parent=1 // pred_region
      %45 = vsyncadd [#allocation7], 0
      %s46 = sshll.u32 %s3, 4
      %s47 = int_to_ptr.hbm [resolvable:$true] %s46
      %s48 = sshll.u32 [#allocation8], 4
      %s49 = int_to_ptr.vmem [resolvable:$true] %s48
      %54 = dma.hbm_to_vmem [thread:$0]  %s47, 128, %s49, [#allocation7], 64, 64, 4
    $region17: #{tpu_custom_call.1} parent=1 // pred_fallthru
      _
    // Predicated region
    $region18: #{tpu_custom_call.1} parent=1 // pred_check
      _
    $region19: #{tpu_custom_call.1} parent=1 // pred_check_branch
      %56 = sbr.rel (0) target = $region21
    $region20: #{tpu_custom_call.1} parent=1 // pred_region
      _
    $region21: #{tpu_custom_call.1} parent=1 // pred_fallthru
      _
    // Predicated region
    $region22: #{tpu_custom_call.1} parent=1 // pred_check
      _
    $region23: #{tpu_custom_call.1} parent=1 // pred_check_branch
      %58 = sbr.rel (0) target = $region25
    $region24: #{tpu_custom_call.1} parent=1 // pred_region
      _
    $region25: #{tpu_custom_call.1} parent=1 // pred_fallthru
      _
    // Predicated region
    $region26: #{tpu_custom_call.1} parent=1 // pred_check
      _
    $region27: #{tpu_custom_call.1} parent=1 // pred_check_branch
      %60 = sbr.rel (0) target = $region29
    $region28: #{tpu_custom_call.1} parent=1 // pred_region
      %62 = vsyncadd [#allocation10], 0
      %s63 = sshll.u32 %s6, 4
      %s64 = int_to_ptr.hbm [resolvable:$true] %s63
      %s65 = sshll.u32 [#allocation9], 4
      %s66 = int_to_ptr.vmem [resolvable:$true] %s65
      %71 = dma.hbm_to_vmem [thread:$0]  %s64, 2304, %s66, [#allocation10], 64, 64, 4
    $region29: #{tpu_custom_call.1} parent=1 // pred_fallthru
      _
    // Predicated region
    $region30: #{tpu_custom_call.1} parent=1 // pred_check
      _
    $region31: #{tpu_custom_call.1} parent=1 // pred_check_branch
      %73 = sbr.rel (0) target = $region33
    $region32: #{tpu_custom_call.1} parent=1 // pred_region
      %75 = dma.done [#allocation4], 2048
    $region33: #{tpu_custom_call.1} parent=1 // pred_fallthru
      _
    // Predicated region
    $region34: #{tpu_custom_call.1} parent=1 // pred_check
      _
    $region35: #{tpu_custom_call.1} parent=1 // pred_check_branch
      %77 = sbr.rel (0) target = $region37
    $region36: #{tpu_custom_call.1} parent=1 // pred_region
      %79 = dma.done [#allocation7], 16
    $region37: #{tpu_custom_call.1} parent=1 // pred_fallthru
      _
    // Predicated region
    $region38: #{tpu_custom_call.1} parent=1 // pred_check
      _
    $region39: #{tpu_custom_call.1} parent=1 // pred_check_branch
      %81 = sbr.rel (0) target = $region41
    $region40: #{tpu_custom_call.1} parent=1 // pred_region
      %83 = dma.done [#allocation7], 128
    $region41: #{tpu_custom_call.1} parent=1 // pred_fallthru
      _
    // Predicated region
    $region42: #{tpu_custom_call.1} parent=1 // pred_check
      _
    $region43: #{tpu_custom_call.1} parent=1 // pred_check_branch
      %85 = sbr.rel (0) target = $region45
    $region44: #{tpu_custom_call.1} parent=1 // pred_region
      %87 = dma.done [#allocation10], 2304
    $region45: #{tpu_custom_call.1} parent=1 // pred_fallthru
      _
    %v89 = vld [vmem:[#allocation3] sm:$0xff]
    %v90 = vld [vmem:[#allocation3 + $0x8] sm:$0xff]
    %v91 = vld [vmem:[#allocation3 + $0x10] sm:$0xff]
    %v92 = vld [vmem:[#allocation3 + $0x18] sm:$0xff]
    %v93 = vld [vmem:[#allocation3 + $0x20] sm:$0xff]
    %v94 = vld [vmem:[#allocation3 + $0x28] sm:$0xff]
    %v95 = vld [vmem:[#allocation3 + $0x30] sm:$0xff]
    %v96 = vld [vmem:[#allocation3 + $0x38] sm:$0xff]
    %v97 = vld [vmem:[#allocation3 + $0x40] sm:$0xff]
    %v98 = vld [vmem:[#allocation3 + $0x48] sm:$0xff]
    %v99 = vld [vmem:[#allocation3 + $0x50] sm:$0xff]
    %v100 = vld [vmem:[#allocation3 + $0x58] sm:$0xff]
    %v101 = vld [vmem:[#allocation3 + $0x60] sm:$0xff]
    %v102 = vld [vmem:[#allocation3 + $0x68] sm:$0xff]
    %v103 = vld [vmem:[#allocation3 + $0x70] sm:$0xff]
    %v104 = vld [vmem:[#allocation3 + $0x78] sm:$0xff]
    %vm105 = vcmask 130048
    %v106 = vsel %vm105, %v89, 0.0
    %v107 = vsel %vm105, %v90, 0.0
    %v108 = vadd.f32 %v106, %v107
    %v109 = vsel %vm105, %v91, 0.0
    %v110 = vadd.f32 %v108, %v109
    %v111 = vsel %vm105, %v92, 0.0
    %v112 = vadd.f32 %v110, %v111
    %v113 = vsel %vm105, %v93, 0.0
    %v114 = vadd.f32 %v112, %v113
    %v115 = vsel %vm105, %v94, 0.0
    %v116 = vadd.f32 %v114, %v115
    %v117 = vsel %vm105, %v95, 0.0
    %v118 = vadd.f32 %v116, %v117
    %v119 = vsel %vm105, %v96, 0.0
    %v120 = vadd.f32 %v118, %v119
    %v121 = vsel %vm105, %v97, 0.0
    %v122 = vadd.f32 %v120, %v121
    %v123 = vsel %vm105, %v98, 0.0
    %v124 = vadd.f32 %v122, %v123
    %v125 = vsel %vm105, %v99, 0.0
    %v126 = vadd.f32 %v124, %v125
    %v127 = vsel %vm105, %v100, 0.0
    %v128 = vadd.f32 %v126, %v127
    %v129 = vsel %vm105, %v101, 0.0
    %v130 = vadd.f32 %v128, %v129
    %v131 = vsel %vm105, %v102, 0.0
    %v132 = vadd.f32 %v130, %v131
    %v133 = vsel %vm105, %v103, 0.0
    %v134 = vadd.f32 %v132, %v133
    %v135 = vsel %vm105, %v104, 0.0
    %v136 = vadd.f32 %v134, %v135
    %v137 = vrot.slane %v136, 4
    %v138 = vadd.f32 %v136, %v137
    %v139 = vrot.slane %v138, 2
    %v140 = vadd.f32 %v138, %v139
    %v141 = vrot.slane %v140, 1
    %v142 = vadd.f32 %v140, %v141
    %v143 = vrcp.pop 128.0
    %v144 = vmul.f32 128.0, %v143
    %v145 = vsub.f32 1.0, %v144
    %v146 = vmul.f32 %v143, %v145
    %v147 = vadd.f32 %v143, %v146
    %vm148 = vweird.f32 %v143
    %v149 = vsel %vm148, %v143, %v147
    %v150 = vmul.f32 %v142, %v149
    %v151 = vmul.f32 %v89, %v89
    %v152 = vmul.f32 %v90, %v90
    %v153 = vmul.f32 %v91, %v91
    %v154 = vmul.f32 %v92, %v92
    %v155 = vmul.f32 %v93, %v93
    %v156 = vmul.f32 %v94, %v94
    %v157 = vmul.f32 %v95, %v95
    %v158 = vmul.f32 %v96, %v96
    %v159 = vmul.f32 %v97, %v97
    %v160 = vmul.f32 %v98, %v98
    %v161 = vmul.f32 %v99, %v99
    %v162 = vmul.f32 %v100, %v100
    %v163 = vmul.f32 %v101, %v101
    %v164 = vmul.f32 %v102, %v102
    %v165 = vmul.f32 %v103, %v103
    %v166 = vmul.f32 %v104, %v104
    %v167 = vsel %vm105, %v151, 0.0
    %v168 = vsel %vm105, %v152, 0.0
    %v169 = vadd.f32 %v167, %v168
    %v170 = vsel %vm105, %v153, 0.0
    %v171 = vadd.f32 %v169, %v170
    %v172 = vsel %vm105, %v154, 0.0
    %v173 = vadd.f32 %v171, %v172
    %v174 = vsel %vm105, %v155, 0.0
    %v175 = vadd.f32 %v173, %v174
    %v176 = vsel %vm105, %v156, 0.0
    %v177 = vadd.f32 %v175, %v176
    %v178 = vsel %vm105, %v157, 0.0
    %v179 = vadd.f32 %v177, %v178
    %v180 = vsel %vm105, %v158, 0.0
    %v181 = vadd.f32 %v179, %v180
    %v182 = vsel %vm105, %v159, 0.0
    %v183 = vadd.f32 %v181, %v182
    %v184 = vsel %vm105, %v160, 0.0
    %v185 = vadd.f32 %v183, %v184
    %v186 = vsel %vm105, %v161, 0.0
    %v187 = vadd.f32 %v185, %v186
    %v188 = vsel %vm105, %v162, 0.0
    %v189 = vadd.f32 %v187, %v188
    %v190 = vsel %vm105, %v163, 0.0
    %v191 = vadd.f32 %v189, %v190
    %v192 = vsel %vm105, %v164, 0.0
    %v193 = vadd.f32 %v191, %v192
    %v194 = vsel %vm105, %v165, 0.0
    %v195 = vadd.f32 %v193, %v194
    %v196 = vsel %vm105, %v166, 0.0
    %v197 = vadd.f32 %v195, %v196
    %v198 = vrot.slane %v197, 4
    %v199 = vadd.f32 %v197, %v198
    %v200 = vrot.slane %v199, 2
    %v201 = vadd.f32 %v199, %v200
    %v202 = vrot.slane %v201, 1
    %v203 = vadd.f32 %v201, %v202
    %v204 = vmul.f32 %v203, %v149
    %v205 = vmul.f32 %v150, %v150
    %v206 = vsub.f32 %v204, %v205
    %v207 = vld [vmem:[#allocation6] sm:$0x1]
    %v208 = vadd.f32 %v206, 1e-05
    %v209 = vrsqrt.pop %v208
    %v210 = vmul.f32 %v209, %v208
    %v211 = vmul.f32 %v210, %v209
    %v212 = vmul.f32 0.5, %v211
    %v213 = vsub.f32 1.5, %v212
    %v214 = vmul.f32 %v209, %v213
    %vm215 = vweird.f32 %v208
    %vm216 = vweird.f32 %v209
    %vm217 = vmor %vm215, %vm216
    %v218 = vsel %vm217, %v209, %v214
    %v219 = vmul.f32 %v207, %v218
    %v220 = vld [vmem:[%s2] sm:$0x1]
    %v221 = vmul.f32 %v150, %v219
    %v222 = vsub.f32 %v220, %v221
    %v224 = vperm.slane %v219, 0
    %v226 = vmul.f32 %v89, %v224
    %v227 = vmul.f32 %v90, %v224
    %v228 = vmul.f32 %v91, %v224
    %v229 = vmul.f32 %v92, %v224
    %v230 = vmul.f32 %v93, %v224
    %v231 = vmul.f32 %v94, %v224
    %v232 = vmul.f32 %v95, %v224
    %v233 = vmul.f32 %v96, %v224
    %v234 = vmul.f32 %v97, %v224
    %v235 = vmul.f32 %v98, %v224
    %v236 = vmul.f32 %v99, %v224
    %v237 = vmul.f32 %v100, %v224
    %v238 = vmul.f32 %v101, %v224
    %v239 = vmul.f32 %v102, %v224
    %v240 = vmul.f32 %v103, %v224
    %v241 = vmul.f32 %v104, %v224
    %v243 = vperm.slane %v222, 0
    %v245 = vadd.f32 %v226, %v243
    %v246 = vadd.f32 %v227, %v243
    %v247 = vadd.f32 %v228, %v243
    %v248 = vadd.f32 %v229, %v243
    %v249 = vadd.f32 %v230, %v243
    %v250 = vadd.f32 %v231, %v243
    %v251 = vadd.f32 %v232, %v243
    %v252 = vadd.f32 %v233, %v243
    %v253 = vadd.f32 %v234, %v243
    %v254 = vadd.f32 %v235, %v243
    %v255 = vadd.f32 %v236, %v243
    %v256 = vadd.f32 %v237, %v243
    %v257 = vadd.f32 %v238, %v243
    %v258 = vadd.f32 %v239, %v243
    %v259 = vadd.f32 %v240, %v243
    %v260 = vadd.f32 %v241, %v243
    %v261 = vmax.f32 %v245, 0.0
    %v262 = vmax.f32 %v246, 0.0
    %v263 = vmax.f32 %v247, 0.0
    %v264 = vmax.f32 %v248, 0.0
    %v265 = vmax.f32 %v249, 0.0
    %v266 = vmax.f32 %v250, 0.0
    %v267 = vmax.f32 %v251, 0.0
    %v268 = vmax.f32 %v252, 0.0
    %v269 = vmax.f32 %v253, 0.0
    %v270 = vmax.f32 %v254, 0.0
    %v271 = vmax.f32 %v255, 0.0
    %v272 = vmax.f32 %v256, 0.0
    %v273 = vmax.f32 %v257, 0.0
    %v274 = vmax.f32 %v258, 0.0
    %v275 = vmax.f32 %v259, 0.0
    %v276 = vmax.f32 %v260, 0.0
    %v277 = vpack.c.bf16 %v262, %v261
    %v278 = vpack.c.bf16 %v264, %v263
    %v279 = vpack.c.bf16 %v266, %v265
    %v280 = vpack.c.bf16 %v268, %v267
    %v281 = vpack.c.bf16 %v270, %v269
    %v282 = vpack.c.bf16 %v272, %v271
    %v283 = vpack.c.bf16 %v274, %v273
    %v284 = vpack.c.bf16 %v276, %v275
    %v285 = vld [vmem:[#allocation8] sm:$0xf]
    %v286 = vld [vmem:[#allocation8 + $0x4] sm:$0xf]
    %v289 = vunpack.c.l.b16 %v285
    %v290 = vunpack.c.l.b16 %v286
    %v291 = vpack.c.b16 %v290, %v289
    %v294 = vsel %vm105, %v277, 0
    %v297 = vsel %vm105, %v278, 0
    %v300 = vsel %vm105, %v279, 0
    %v303 = vsel %vm105, %v280, 0
    %v306 = vsel %vm105, %v281, 0
    %v309 = vsel %vm105, %v282, 0
    %v312 = vsel %vm105, %v283, 0
    %v315 = vsel %vm105, %v284, 0
    %317 = vmatpush.bf16.msra.mxu0 0
    %318 = vmatpush.bf16.msra.mxu0 0
    %319 = vmatpush.bf16.msra.mxu0 0
    %320 = vmatpush.bf16.msra.mxu0 0
    %321 = vmatpush.bf16.msra.mxu0 0
    %322 = vmatpush.bf16.msra.mxu0 0
    %323 = vmatpush.bf16.msra.mxu0 0
    %324 = vmatpush.bf16.msra.mxu0 %v291
    %325 = vmatmul.bf16.gmra.mxu0 %v294
    %v326 = vpop.f32.mrf.mxu0
    %v327 = vadd.f32 0.0, %v326
    %v328 = vpop.f32.mrf.mxu0
    %v329 = vadd.f32 0.0, %v328
    %330 = vmatmul.bf16.gmra.mxu0 %v297
    %v331 = vpop.f32.mrf.mxu0
    %v332 = vadd.f32 0.0, %v331
    %v333 = vpop.f32.mrf.mxu0
    %v334 = vadd.f32 0.0, %v333
    %335 = vmatmul.bf16.gmra.mxu0 %v300
    %v336 = vpop.f32.mrf.mxu0
    %v337 = vadd.f32 0.0, %v336
    %v338 = vpop.f32.mrf.mxu0
    %v339 = vadd.f32 0.0, %v338
    %340 = vmatmul.bf16.gmra.mxu0 %v303
    %v341 = vpop.f32.mrf.mxu0
    %v342 = vadd.f32 0.0, %v341
    %v343 = vpop.f32.mrf.mxu0
    %v344 = vadd.f32 0.0, %v343
    %345 = vmatmul.bf16.gmra.mxu0 %v306
    %v346 = vpop.f32.mrf.mxu0
    %v347 = vadd.f32 0.0, %v346
    %v348 = vpop.f32.mrf.mxu0
    %v349 = vadd.f32 0.0, %v348
    %350 = vmatmul.bf16.gmra.mxu0 %v309
    %v351 = vpop.f32.mrf.mxu0
    %v352 = vadd.f32 0.0, %v351
    %v353 = vpop.f32.mrf.mxu0
    %v354 = vadd.f32 0.0, %v353
    %355 = vmatmul.bf16.gmra.mxu0 %v312
    %v356 = vpop.f32.mrf.mxu0
    %v357 = vadd.f32 0.0, %v356
    %v358 = vpop.f32.mrf.mxu0
    %v359 = vadd.f32 0.0, %v358
    %360 = vmatmul.bf16.gmra.mxu0 %v315
    %v361 = vpop.f32.mrf.mxu0
    %v362 = vadd.f32 0.0, %v361
    %v363 = vpop.f32.mrf.mxu0
    %v364 = vadd.f32 0.0, %v363
    %365 = vdwg.mxu0
    %vm366 = vcmask 261120
    %v367 = vsel %vm366, %v327, 0.0
    %v368 = vsel %vm366, %v329, 0.0
    %v369 = vadd.f32 %v367, %v368
    %v370 = vsel %vm366, %v332, 0.0
    %v371 = vadd.f32 %v369, %v370
    %v372 = vsel %vm366, %v334, 0.0
    %v373 = vadd.f32 %v371, %v372
    %v374 = vsel %vm366, %v337, 0.0
    %v375 = vadd.f32 %v373, %v374
    %v376 = vsel %vm366, %v339, 0.0
    %v377 = vadd.f32 %v375, %v376
    %v378 = vsel %vm366, %v342, 0.0
    %v379 = vadd.f32 %v377, %v378
    %v380 = vsel %vm366, %v344, 0.0
    %v381 = vadd.f32 %v379, %v380
    %v382 = vsel %vm366, %v347, 0.0
    %v383 = vadd.f32 %v381, %v382
    %v384 = vsel %vm366, %v349, 0.0
    %v385 = vadd.f32 %v383, %v384
    %v386 = vsel %vm366, %v352, 0.0
    %v387 = vadd.f32 %v385, %v386
    %v388 = vsel %vm366, %v354, 0.0
    %v389 = vadd.f32 %v387, %v388
    %v390 = vsel %vm366, %v357, 0.0
    %v391 = vadd.f32 %v389, %v390
    %v392 = vsel %vm366, %v359, 0.0
    %v393 = vadd.f32 %v391, %v392
    %v394 = vsel %vm366, %v362, 0.0
    %v395 = vadd.f32 %v393, %v394
    %v396 = vsel %vm366, %v364, 0.0
    %v397 = vadd.f32 %v395, %v396
    %v398 = vrot.slane %v397, 4
    %v399 = vadd.f32 %v397, %v398
    %v400 = vrot.slane %v399, 2
    %v401 = vadd.f32 %v399, %v400
    %v402 = vrot.slane %v401, 1
    %v403 = vadd.f32 %v401, %v402
    %v404 = vmul.f32 %v403, %v149
    %v405 = vmul.f32 %v327, %v327
    %v406 = vmul.f32 %v329, %v329
    %v407 = vmul.f32 %v332, %v332
    %v408 = vmul.f32 %v334, %v334
    %v409 = vmul.f32 %v337, %v337
    %v410 = vmul.f32 %v339, %v339
    %v411 = vmul.f32 %v342, %v342
    %v412 = vmul.f32 %v344, %v344
    %v413 = vmul.f32 %v347, %v347
    %v414 = vmul.f32 %v349, %v349
    %v415 = vmul.f32 %v352, %v352
    %v416 = vmul.f32 %v354, %v354
    %v417 = vmul.f32 %v357, %v357
    %v418 = vmul.f32 %v359, %v359
    %v419 = vmul.f32 %v362, %v362
    %v420 = vmul.f32 %v364, %v364
    %v421 = vsel %vm366, %v405, 0.0
    %v422 = vsel %vm366, %v406, 0.0
    %v423 = vadd.f32 %v421, %v422
    %v424 = vsel %vm366, %v407, 0.0
    %v425 = vadd.f32 %v423, %v424
    %v426 = vsel %vm366, %v408, 0.0
    %v427 = vadd.f32 %v425, %v426
    %v428 = vsel %vm366, %v409, 0.0
    %v429 = vadd.f32 %v427, %v428
    %v430 = vsel %vm366, %v410, 0.0
    %v431 = vadd.f32 %v429, %v430
    %v432 = vsel %vm366, %v411, 0.0
    %v433 = vadd.f32 %v431, %v432
    %v434 = vsel %vm366, %v412, 0.0
    %v435 = vadd.f32 %v433, %v434
    %v436 = vsel %vm366, %v413, 0.0
    %v437 = vadd.f32 %v435, %v436
    %v438 = vsel %vm366, %v414, 0.0
    %v439 = vadd.f32 %v437, %v438
    %v440 = vsel %vm366, %v415, 0.0
    %v441 = vadd.f32 %v439, %v440
    %v442 = vsel %vm366, %v416, 0.0
    %v443 = vadd.f32 %v441, %v442
    %v444 = vsel %vm366, %v417, 0.0
    %v445 = vadd.f32 %v443, %v444
    %v446 = vsel %vm366, %v418, 0.0
    %v447 = vadd.f32 %v445, %v446
    %v448 = vsel %vm366, %v419, 0.0
    %v449 = vadd.f32 %v447, %v448
    %v450 = vsel %vm366, %v420, 0.0
    %v451 = vadd.f32 %v449, %v450
    %v452 = vrot.slane %v451, 4
    %v453 = vadd.f32 %v451, %v452
    %v454 = vrot.slane %v453, 2
    %v455 = vadd.f32 %v453, %v454
    %v456 = vrot.slane %v455, 1
    %v457 = vadd.f32 %v455, %v456
    %v458 = vmul.f32 %v457, %v149
    %v459 = vmul.f32 %v404, %v404
    %v460 = vsub.f32 %v458, %v459
    %v461 = vld [vmem:[%s4] sm:$0x1]
    %v462 = vadd.f32 %v460, 1e-05
    %v463 = vrsqrt.pop %v462
    %v464 = vmul.f32 %v463, %v462
    %v465 = vmul.f32 %v464, %v463
    %v466 = vmul.f32 0.5, %v465
    %v467 = vsub.f32 1.5, %v466
    %v468 = vmul.f32 %v463, %v467
    %vm469 = vweird.f32 %v462
    %vm470 = vweird.f32 %v463
    %vm471 = vmor %vm469, %vm470
    %v472 = vsel %vm471, %v463, %v468
    %v473 = vmul.f32 %v461, %v472
    %v474 = vld [vmem:[%s5] sm:$0x1]
    %v475 = vmul.f32 %v404, %v473
    %v476 = vsub.f32 %v474, %v475
    %v478 = vperm.slane %v473, 0
    %v480 = vmul.f32 %v327, %v478
    %v481 = vmul.f32 %v329, %v478
    %v482 = vmul.f32 %v332, %v478
    %v483 = vmul.f32 %v334, %v478
    %v484 = vmul.f32 %v337, %v478
    %v485 = vmul.f32 %v339, %v478
    %v486 = vmul.f32 %v342, %v478
    %v487 = vmul.f32 %v344, %v478
    %v488 = vmul.f32 %v347, %v478
    %v489 = vmul.f32 %v349, %v478
    %v490 = vmul.f32 %v352, %v478
    %v491 = vmul.f32 %v354, %v478
    %v492 = vmul.f32 %v357, %v478
    %v493 = vmul.f32 %v359, %v478
    %v494 = vmul.f32 %v362, %v478
    %v495 = vmul.f32 %v364, %v478
    %v497 = vperm.slane %v476, 0
    %v499 = vadd.f32 %v480, %v497
    %v500 = vadd.f32 %v481, %v497
    %v501 = vadd.f32 %v482, %v497
    %v502 = vadd.f32 %v483, %v497
    %v503 = vadd.f32 %v484, %v497
    %v504 = vadd.f32 %v485, %v497
    %v505 = vadd.f32 %v486, %v497
    %v506 = vadd.f32 %v487, %v497
    %v507 = vadd.f32 %v488, %v497
    %v508 = vadd.f32 %v489, %v497
    %v509 = vadd.f32 %v490, %v497
    %v510 = vadd.f32 %v491, %v497
    %v511 = vadd.f32 %v492, %v497
    %v512 = vadd.f32 %v493, %v497
    %v513 = vadd.f32 %v494, %v497
    %v514 = vadd.f32 %v495, %v497
    %v515 = vmax.f32 %v499, 0.0
    %v516 = vmax.f32 %v500, 0.0
    %v517 = vmax.f32 %v501, 0.0
    %v518 = vmax.f32 %v502, 0.0
    %v519 = vmax.f32 %v503, 0.0
    %v520 = vmax.f32 %v504, 0.0
    %v521 = vmax.f32 %v505, 0.0
    %v522 = vmax.f32 %v506, 0.0
    %v523 = vmax.f32 %v507, 0.0
    %v524 = vmax.f32 %v508, 0.0
    %v525 = vmax.f32 %v509, 0.0
    %v526 = vmax.f32 %v510, 0.0
    %v527 = vmax.f32 %v511, 0.0
    %v528 = vmax.f32 %v512, 0.0
    %v529 = vmax.f32 %v513, 0.0
    %v530 = vmax.f32 %v514, 0.0
    %531 = vst.msk [vmem:[#allocation2] sm:$0xff] %vm366, 0.0
    %vm532 = vcmask 254976
    %533 = vst.msk [vmem:[#allocation2 + $0x8] sm:$0x3] %vm532, 0.0
    %534 = vst.msk [vmem:[#allocation2 + $0xa0] sm:$0xff] %vm366, 0.0
    %535 = vst.msk [vmem:[#allocation2 + $0xa8] sm:$0x3] %vm532, 0.0
    %s536 = scalar_lea.vmem [#allocation2], 144
    %537 = vst.msk [vmem:[%s536] sm:$0xff] %vm366, 0.0
    %538 = vst.msk [vmem:[%s536 + $0x8] sm:$0x3] %vm532, 0.0
    %539 = vst.msk [vmem:[%s536 + $0xa0] sm:$0xff] %vm366, 0.0
    %540 = vst.msk [vmem:[%s536 + $0xa8] sm:$0x3] %vm532, 0.0
    %s541 = scalar_lea.vmem [#allocation2], 16
    %vm542 = vcmask 253952
    %543 = vst.msk [vmem:[%s541] sm:$0x1] %vm542, 0.0
    %544 = vst.msk [vmem:[%s541 + $0x10] sm:$0x1] %vm542, 0.0
    %545 = vst.msk [vmem:[%s541 + $0x20] sm:$0x1] %vm542, 0.0
    %546 = vst.msk [vmem:[%s541 + $0x30] sm:$0x1] %vm542, 0.0
    %547 = vst.msk [vmem:[%s541 + $0x40] sm:$0x1] %vm542, 0.0
    %548 = vst.msk [vmem:[%s541 + $0x50] sm:$0x1] %vm542, 0.0
    %549 = vst.msk [vmem:[%s541 + $0x60] sm:$0x1] %vm542, 0.0
    %550 = vst.msk [vmem:[%s541 + $0x70] sm:$0x1] %vm542, 0.0
    %551 = vst.msk [vmem:[%s541 + $0xa0] sm:$0x1] %vm542, 0.0
    %552 = vst.msk [vmem:[%s541 + $0xb0] sm:$0x1] %vm542, 0.0
    %553 = vst.msk [vmem:[%s541 + $0xc0] sm:$0x1] %vm542, 0.0
    %554 = vst.msk [vmem:[%s541 + $0xd0] sm:$0x1] %vm542, 0.0
    %555 = vst.msk [vmem:[%s541 + $0xe0] sm:$0x1] %vm542, 0.0
    %556 = vst.msk [vmem:[%s541 + $0xf0] sm:$0x1] %vm542, 0.0
    %557 = vst.msk [vmem:[%s541 + $0x100] sm:$0x1] %vm542, 0.0
    %558 = vst.msk [vmem:[%s541 + $0x110] sm:$0x1] %vm542, 0.0
    %559 = vst.msk [vmem:[%s541 + $0x9] sm:$0x1] %vm542, 0.0
    %560 = vst.msk [vmem:[%s541 + $0x19] sm:$0x1] %vm542, 0.0
    %561 = vst.msk [vmem:[%s541 + $0x29] sm:$0x1] %vm542, 0.0
    %562 = vst.msk [vmem:[%s541 + $0x39] sm:$0x1] %vm542, 0.0
    %563 = vst.msk [vmem:[%s541 + $0x49] sm:$0x1] %vm542, 0.0
    %564 = vst.msk [vmem:[%s541 + $0x59] sm:$0x1] %vm542, 0.0
    %565 = vst.msk [vmem:[%s541 + $0x69] sm:$0x1] %vm542, 0.0
    %566 = vst.msk [vmem:[%s541 + $0x79] sm:$0x1] %vm542, 0.0
    %567 = vst.msk [vmem:[%s541 + $0xa9] sm:$0x1] %vm542, 0.0
    %568 = vst.msk [vmem:[%s541 + $0xb9] sm:$0x1] %vm542, 0.0
    %569 = vst.msk [vmem:[%s541 + $0xc9] sm:$0x1] %vm542, 0.0
    %570 = vst.msk [vmem:[%s541 + $0xd9] sm:$0x1] %vm542, 0.0
    %571 = vst.msk [vmem:[%s541 + $0xe9] sm:$0x1] %vm542, 0.0
    %572 = vst.msk [vmem:[%s541 + $0xf9] sm:$0x1] %vm542, 0.0
    %573 = vst.msk [vmem:[%s541 + $0x109] sm:$0x1] %vm542, 0.0
    %574 = vst.msk [vmem:[%s541 + $0x119] sm:$0x1] %vm542, 0.0
    %575 = vst.msk [vmem:[%s541 + $0x1] sm:$0xff] %vm366, %v515
    %576 = vst.msk [vmem:[%s541 + $0x11] sm:$0xff] %vm366, %v516
    %577 = vst.msk [vmem:[%s541 + $0x21] sm:$0xff] %vm366, %v517
    %578 = vst.msk [vmem:[%s541 + $0x31] sm:$0xff] %vm366, %v518
    %579 = vst.msk [vmem:[%s541 + $0x41] sm:$0xff] %vm366, %v519
    %580 = vst.msk [vmem:[%s541 + $0x51] sm:$0xff] %vm366, %v520
    %581 = vst.msk [vmem:[%s541 + $0x61] sm:$0xff] %vm366, %v521
    %582 = vst.msk [vmem:[%s541 + $0x71] sm:$0xff] %vm366, %v522
    %583 = vst.msk [vmem:[%s541 + $0xa1] sm:$0xff] %vm366, %v523
    %584 = vst.msk [vmem:[%s541 + $0xb1] sm:$0xff] %vm366, %v524
    %585 = vst.msk [vmem:[%s541 + $0xc1] sm:$0xff] %vm366, %v525
    %586 = vst.msk [vmem:[%s541 + $0xd1] sm:$0xff] %vm366, %v526
    %587 = vst.msk [vmem:[%s541 + $0xe1] sm:$0xff] %vm366, %v527
    %588 = vst.msk [vmem:[%s541 + $0xf1] sm:$0xff] %vm366, %v528
    %589 = vst.msk [vmem:[%s541 + $0x101] sm:$0xff] %vm366, %v529
    %590 = vst.msk [vmem:[%s541 + $0x111] sm:$0xff] %vm366, %v530
    %v591 = vld [vmem:[#allocation2] sm:$0xff]
    %v592 = vld [vmem:[#allocation2 + $0x10] sm:$0xff]
    %v593 = vld [vmem:[#allocation2 + $0x20] sm:$0xff]
    %v594 = vld [vmem:[#allocation2 + $0x30] sm:$0xff]
    %v595 = vld [vmem:[#allocation2 + $0x40] sm:$0xff]
    %v596 = vld [vmem:[#allocation2 + $0x50] sm:$0xff]
    %v597 = vld [vmem:[#allocation2 + $0x60] sm:$0xff]
    %v598 = vld [vmem:[#allocation2 + $0x70] sm:$0xff]
    %v599 = vld [vmem:[#allocation2 + $0xa0] sm:$0xff]
    %v600 = vld [vmem:[#allocation2 + $0xb0] sm:$0xff]
    %v601 = vld [vmem:[#allocation2 + $0xc0] sm:$0xff]
    %v602 = vld [vmem:[#allocation2 + $0xd0] sm:$0xff]
    %v603 = vld [vmem:[#allocation2 + $0xe0] sm:$0xff]
    %v604 = vld [vmem:[#allocation2 + $0xf0] sm:$0xff]
    %v605 = vld [vmem:[#allocation2 + $0x100] sm:$0xff]
    %v606 = vld [vmem:[#allocation2 + $0x110] sm:$0xff]
    %v607 = vld [vmem:[#allocation2 + $0x1] sm:$0xff]
    %v608 = vld [vmem:[#allocation2 + $0x11] sm:$0xff]
    %v609 = vld [vmem:[#allocation2 + $0x21] sm:$0xff]
    %v610 = vld [vmem:[#allocation2 + $0x31] sm:$0xff]
    %v611 = vld [vmem:[#allocation2 + $0x41] sm:$0xff]
    %v612 = vld [vmem:[#allocation2 + $0x51] sm:$0xff]
    %v613 = vld [vmem:[#allocation2 + $0x61] sm:$0xff]
    %v614 = vld [vmem:[#allocation2 + $0x71] sm:$0xff]
    %v615 = vld [vmem:[#allocation2 + $0xa1] sm:$0xff]
    %v616 = vld [vmem:[#allocation2 + $0xb1] sm:$0xff]
    %v617 = vld [vmem:[#allocation2 + $0xc1] sm:$0xff]
    %v618 = vld [vmem:[#allocation2 + $0xd1] sm:$0xff]
    %v619 = vld [vmem:[#allocation2 + $0xe1] sm:$0xff]
    %v620 = vld [vmem:[#allocation2 + $0xf1] sm:$0xff]
    %v621 = vld [vmem:[#allocation2 + $0x101] sm:$0xff]
    %v622 = vld [vmem:[#allocation2 + $0x111] sm:$0xff]
    %v623 = vld [vmem:[#allocation2 + $0x2] sm:$0xff]
    %v624 = vld [vmem:[#allocation2 + $0x12] sm:$0xff]
    %v625 = vld [vmem:[#allocation2 + $0x22] sm:$0xff]
    %v626 = vld [vmem:[#allocation2 + $0x32] sm:$0xff]
    %v627 = vld [vmem:[#allocation2 + $0x42] sm:$0xff]
    %v628 = vld [vmem:[#allocation2 + $0x52] sm:$0xff]
    %v629 = vld [vmem:[#allocation2 + $0x62] sm:$0xff]
    %v630 = vld [vmem:[#allocation2 + $0x72] sm:$0xff]
    %v631 = vld [vmem:[#allocation2 + $0xa2] sm:$0xff]
    %v632 = vld [vmem:[#allocation2 + $0xb2] sm:$0xff]
    %v633 = vld [vmem:[#allocation2 + $0xc2] sm:$0xff]
    %v634 = vld [vmem:[#allocation2 + $0xd2] sm:$0xff]
    %v635 = vld [vmem:[#allocation2 + $0xe2] sm:$0xff]
    %v636 = vld [vmem:[#allocation2 + $0xf2] sm:$0xff]
    %v637 = vld [vmem:[#allocation2 + $0x102] sm:$0xff]
    %v638 = vld [vmem:[#allocation2 + $0x112] sm:$0xff]
    %v639 = vld [vmem:[%s541] sm:$0xff]
    %v640 = vld [vmem:[%s541 + $0x10] sm:$0xff]
    %v641 = vld [vmem:[%s541 + $0x20] sm:$0xff]
    %v642 = vld [vmem:[%s541 + $0x30] sm:$0xff]
    %v643 = vld [vmem:[%s541 + $0x40] sm:$0xff]
    %v644 = vld [vmem:[%s541 + $0x50] sm:$0xff]
    %v645 = vld [vmem:[%s541 + $0x60] sm:$0xff]
    %v646 = vld [vmem:[%s541 + $0x70] sm:$0xff]
    %v647 = vld [vmem:[%s541 + $0xa0] sm:$0xff]
    %v648 = vld [vmem:[%s541 + $0xb0] sm:$0xff]
    %v649 = vld [vmem:[%s541 + $0xc0] sm:$0xff]
    %v650 = vld [vmem:[%s541 + $0xd0] sm:$0xff]
    %v651 = vld [vmem:[%s541 + $0xe0] sm:$0xff]
    %v652 = vld [vmem:[%s541 + $0xf0] sm:$0xff]
    %v653 = vld [vmem:[%s541 + $0x100] sm:$0xff]
    %v654 = vld [vmem:[%s541 + $0x110] sm:$0xff]
    %v655 = vld [vmem:[%s541 + $0x1] sm:$0xff]
    %v656 = vld [vmem:[%s541 + $0x11] sm:$0xff]
    %v657 = vld [vmem:[%s541 + $0x21] sm:$0xff]
    %v658 = vld [vmem:[%s541 + $0x31] sm:$0xff]
    %v659 = vld [vmem:[%s541 + $0x41] sm:$0xff]
    %v660 = vld [vmem:[%s541 + $0x51] sm:$0xff]
    %v661 = vld [vmem:[%s541 + $0x61] sm:$0xff]
    %v662 = vld [vmem:[%s541 + $0x71] sm:$0xff]
    %v663 = vld [vmem:[%s541 + $0xa1] sm:$0xff]
    %v664 = vld [vmem:[%s541 + $0xb1] sm:$0xff]
    %v665 = vld [vmem:[%s541 + $0xc1] sm:$0xff]
    %v666 = vld [vmem:[%s541 + $0xd1] sm:$0xff]
    %v667 = vld [vmem:[%s541 + $0xe1] sm:$0xff]
    %v668 = vld [vmem:[%s541 + $0xf1] sm:$0xff]
    %v669 = vld [vmem:[%s541 + $0x101] sm:$0xff]
    %v670 = vld [vmem:[%s541 + $0x111] sm:$0xff]
    %v671 = vld [vmem:[%s541 + $0x2] sm:$0xff]
    %v672 = vld [vmem:[%s541 + $0x12] sm:$0xff]
    %v673 = vld [vmem:[%s541 + $0x22] sm:$0xff]
    %v674 = vld [vmem:[%s541 + $0x32] sm:$0xff]
    %v675 = vld [vmem:[%s541 + $0x42] sm:$0xff]
    %v676 = vld [vmem:[%s541 + $0x52] sm:$0xff]
    %v677 = vld [vmem:[%s541 + $0x62] sm:$0xff]
    %v678 = vld [vmem:[%s541 + $0x72] sm:$0xff]
    %v679 = vld [vmem:[%s541 + $0xa2] sm:$0xff]
    %v680 = vld [vmem:[%s541 + $0xb2] sm:$0xff]
    %v681 = vld [vmem:[%s541 + $0xc2] sm:$0xff]
    %v682 = vld [vmem:[%s541 + $0xd2] sm:$0xff]
    %v683 = vld [vmem:[%s541 + $0xe2] sm:$0xff]
    %v684 = vld [vmem:[%s541 + $0xf2] sm:$0xff]
    %v685 = vld [vmem:[%s541 + $0x102] sm:$0xff]
    %v686 = vld [vmem:[%s541 + $0x112] sm:$0xff]
    %s687 = scalar_lea.vmem [#allocation2], 32
    %v688 = vld [vmem:[%s687] sm:$0xff]
    %v689 = vld [vmem:[%s687 + $0x10] sm:$0xff]
    %v690 = vld [vmem:[%s687 + $0x20] sm:$0xff]
    %v691 = vld [vmem:[%s687 + $0x30] sm:$0xff]
    %v692 = vld [vmem:[%s687 + $0x40] sm:$0xff]
    %v693 = vld [vmem:[%s687 + $0x50] sm:$0xff]
    %v694 = vld [vmem:[%s687 + $0x60] sm:$0xff]
    %v695 = vld [vmem:[%s687 + $0x70] sm:$0xff]
    %v696 = vld [vmem:[%s687 + $0xa0] sm:$0xff]
    %v697 = vld [vmem:[%s687 + $0xb0] sm:$0xff]
    %v698 = vld [vmem:[%s687 + $0xc0] sm:$0xff]
    %v699 = vld [vmem:[%s687 + $0xd0] sm:$0xff]
    %v700 = vld [vmem:[%s687 + $0xe0] sm:$0xff]
    %v701 = vld [vmem:[%s687 + $0xf0] sm:$0xff]
    %v702 = vld [vmem:[%s687 + $0x100] sm:$0xff]
    %v703 = vld [vmem:[%s687 + $0x110] sm:$0xff]
    %v704 = vld [vmem:[%s687 + $0x1] sm:$0xff]
    %v705 = vld [vmem:[%s687 + $0x11] sm:$0xff]
    %v706 = vld [vmem:[%s687 + $0x21] sm:$0xff]
    %v707 = vld [vmem:[%s687 + $0x31] sm:$0xff]
    %v708 = vld [vmem:[%s687 + $0x41] sm:$0xff]
    %v709 = vld [vmem:[%s687 + $0x51] sm:$0xff]
    %v710 = vld [vmem:[%s687 + $0x61] sm:$0xff]
    %v711 = vld [vmem:[%s687 + $0x71] sm:$0xff]
    %v712 = vld [vmem:[%s687 + $0xa1] sm:$0xff]
    %v713 = vld [vmem:[%s687 + $0xb1] sm:$0xff]
    %v714 = vld [vmem:[%s687 + $0xc1] sm:$0xff]
    %v715 = vld [vmem:[%s687 + $0xd1] sm:$0xff]
    %v716 = vld [vmem:[%s687 + $0xe1] sm:$0xff]
    %v717 = vld [vmem:[%s687 + $0xf1] sm:$0xff]
    %v718 = vld [vmem:[%s687 + $0x101] sm:$0xff]
    %v719 = vld [vmem:[%s687 + $0x111] sm:$0xff]
    %v720 = vld [vmem:[%s687 + $0x2] sm:$0xff]
    %v721 = vld [vmem:[%s687 + $0x12] sm:$0xff]
    %v722 = vld [vmem:[%s687 + $0x22] sm:$0xff]
    %v723 = vld [vmem:[%s687 + $0x32] sm:$0xff]
    %v724 = vld [vmem:[%s687 + $0x42] sm:$0xff]
    %v725 = vld [vmem:[%s687 + $0x52] sm:$0xff]
    %v726 = vld [vmem:[%s687 + $0x62] sm:$0xff]
    %v727 = vld [vmem:[%s687 + $0x72] sm:$0xff]
    %v728 = vld [vmem:[%s687 + $0xa2] sm:$0xff]
    %v729 = vld [vmem:[%s687 + $0xb2] sm:$0xff]
    %v730 = vld [vmem:[%s687 + $0xc2] sm:$0xff]
    %v731 = vld [vmem:[%s687 + $0xd2] sm:$0xff]
    %v732 = vld [vmem:[%s687 + $0xe2] sm:$0xff]
    %v733 = vld [vmem:[%s687 + $0xf2] sm:$0xff]
    %v734 = vld [vmem:[%s687 + $0x102] sm:$0xff]
    %v735 = vld [vmem:[%s687 + $0x112] sm:$0xff]
    %752 = vrot.lane.b32.xlu0 %v607, 32
    %v753 = vpop.permute.xlu0 %752
    %754 = vrot.lane.b32.xlu0 %v608, 32
    %v755 = vpop.permute.xlu0 %754
    %756 = vrot.lane.b32.xlu0 %v609, 32
    %v757 = vpop.permute.xlu0 %756
    %758 = vrot.lane.b32.xlu0 %v610, 32
    %v759 = vpop.permute.xlu0 %758
    %760 = vrot.lane.b32.xlu0 %v611, 32
    %v761 = vpop.permute.xlu0 %760
    %762 = vrot.lane.b32.xlu0 %v612, 32
    %v763 = vpop.permute.xlu0 %762
    %764 = vrot.lane.b32.xlu0 %v613, 32
    %v765 = vpop.permute.xlu0 %764
    %766 = vrot.lane.b32.xlu0 %v614, 32
    %v767 = vpop.permute.xlu0 %766
    %768 = vrot.lane.b32.xlu0 %v615, 32
    %v769 = vpop.permute.xlu0 %768
    %770 = vrot.lane.b32.xlu0 %v616, 32
    %v771 = vpop.permute.xlu0 %770
    %772 = vrot.lane.b32.xlu0 %v617, 32
    %v773 = vpop.permute.xlu0 %772
    %774 = vrot.lane.b32.xlu0 %v618, 32
    %v775 = vpop.permute.xlu0 %774
    %776 = vrot.lane.b32.xlu0 %v619, 32
    %v777 = vpop.permute.xlu0 %776
    %778 = vrot.lane.b32.xlu0 %v620, 32
    %v779 = vpop.permute.xlu0 %778
    %780 = vrot.lane.b32.xlu0 %v621, 32
    %v781 = vpop.permute.xlu0 %780
    %782 = vrot.lane.b32.xlu0 %v622, 32
    %v783 = vpop.permute.xlu0 %782
    %816 = vrot.lane.b32.xlu0 %v623, 64
    %v817 = vpop.permute.xlu0 %816
    %818 = vrot.lane.b32.xlu0 %v624, 64
    %v819 = vpop.permute.xlu0 %818
    %820 = vrot.lane.b32.xlu0 %v625, 64
    %v821 = vpop.permute.xlu0 %820
    %822 = vrot.lane.b32.xlu0 %v626, 64
    %v823 = vpop.permute.xlu0 %822
    %824 = vrot.lane.b32.xlu0 %v627, 64
    %v825 = vpop.permute.xlu0 %824
    %826 = vrot.lane.b32.xlu0 %v628, 64
    %v827 = vpop.permute.xlu0 %826
    %828 = vrot.lane.b32.xlu0 %v629, 64
    %v829 = vpop.permute.xlu0 %828
    %830 = vrot.lane.b32.xlu0 %v630, 64
    %v831 = vpop.permute.xlu0 %830
    %832 = vrot.lane.b32.xlu0 %v631, 64
    %v833 = vpop.permute.xlu0 %832
    %834 = vrot.lane.b32.xlu0 %v632, 64
    %v835 = vpop.permute.xlu0 %834
    %836 = vrot.lane.b32.xlu0 %v633, 64
    %v837 = vpop.permute.xlu0 %836
    %838 = vrot.lane.b32.xlu0 %v634, 64
    %v839 = vpop.permute.xlu0 %838
    %840 = vrot.lane.b32.xlu0 %v635, 64
    %v841 = vpop.permute.xlu0 %840
    %842 = vrot.lane.b32.xlu0 %v636, 64
    %v843 = vpop.permute.xlu0 %842
    %844 = vrot.lane.b32.xlu0 %v637, 64
    %v845 = vpop.permute.xlu0 %844
    %846 = vrot.lane.b32.xlu0 %v638, 64
    %v847 = vpop.permute.xlu0 %846
    %880 = vrot.lane.b32.xlu0 %v639, 96
    %v881 = vpop.permute.xlu0 %880
    %882 = vrot.lane.b32.xlu0 %v640, 96
    %v883 = vpop.permute.xlu0 %882
    %884 = vrot.lane.b32.xlu0 %v641, 96
    %v885 = vpop.permute.xlu0 %884
    %886 = vrot.lane.b32.xlu0 %v642, 96
    %v887 = vpop.permute.xlu0 %886
    %888 = vrot.lane.b32.xlu0 %v643, 96
    %v889 = vpop.permute.xlu0 %888
    %890 = vrot.lane.b32.xlu0 %v644, 96
    %v891 = vpop.permute.xlu0 %890
    %892 = vrot.lane.b32.xlu0 %v645, 96
    %v893 = vpop.permute.xlu0 %892
    %894 = vrot.lane.b32.xlu0 %v646, 96
    %v895 = vpop.permute.xlu0 %894
    %896 = vrot.lane.b32.xlu0 %v647, 96
    %v897 = vpop.permute.xlu0 %896
    %898 = vrot.lane.b32.xlu0 %v648, 96
    %v899 = vpop.permute.xlu0 %898
    %900 = vrot.lane.b32.xlu0 %v649, 96
    %v901 = vpop.permute.xlu0 %900
    %902 = vrot.lane.b32.xlu0 %v650, 96
    %v903 = vpop.permute.xlu0 %902
    %904 = vrot.lane.b32.xlu0 %v651, 96
    %v905 = vpop.permute.xlu0 %904
    %906 = vrot.lane.b32.xlu0 %v652, 96
    %v907 = vpop.permute.xlu0 %906
    %908 = vrot.lane.b32.xlu0 %v653, 96
    %v909 = vpop.permute.xlu0 %908
    %910 = vrot.lane.b32.xlu0 %v654, 96
    %v911 = vpop.permute.xlu0 %910
    %944 = vrot.lane.b32.xlu0 %v671, 32
    %v945 = vpop.permute.xlu0 %944
    %946 = vrot.lane.b32.xlu0 %v672, 32
    %v947 = vpop.permute.xlu0 %946
    %948 = vrot.lane.b32.xlu0 %v673, 32
    %v949 = vpop.permute.xlu0 %948
    %950 = vrot.lane.b32.xlu0 %v674, 32
    %v951 = vpop.permute.xlu0 %950
    %952 = vrot.lane.b32.xlu0 %v675, 32
    %v953 = vpop.permute.xlu0 %952
    %954 = vrot.lane.b32.xlu0 %v676, 32
    %v955 = vpop.permute.xlu0 %954
    %956 = vrot.lane.b32.xlu0 %v677, 32
    %v957 = vpop.permute.xlu0 %956
    %958 = vrot.lane.b32.xlu0 %v678, 32
    %v959 = vpop.permute.xlu0 %958
    %960 = vrot.lane.b32.xlu0 %v679, 32
    %v961 = vpop.permute.xlu0 %960
    %962 = vrot.lane.b32.xlu0 %v680, 32
    %v963 = vpop.permute.xlu0 %962
    %964 = vrot.lane.b32.xlu0 %v681, 32
    %v965 = vpop.permute.xlu0 %964
    %966 = vrot.lane.b32.xlu0 %v682, 32
    %v967 = vpop.permute.xlu0 %966
    %968 = vrot.lane.b32.xlu0 %v683, 32
    %v969 = vpop.permute.xlu0 %968
    %970 = vrot.lane.b32.xlu0 %v684, 32
    %v971 = vpop.permute.xlu0 %970
    %972 = vrot.lane.b32.xlu0 %v685, 32
    %v973 = vpop.permute.xlu0 %972
    %974 = vrot.lane.b32.xlu0 %v686, 32
    %v975 = vpop.permute.xlu0 %974
    %1008 = vrot.lane.b32.xlu0 %v688, 64
    %v1009 = vpop.permute.xlu0 %1008
    %1010 = vrot.lane.b32.xlu0 %v689, 64
    %v1011 = vpop.permute.xlu0 %1010
    %1012 = vrot.lane.b32.xlu0 %v690, 64
    %v1013 = vpop.permute.xlu0 %1012
    %1014 = vrot.lane.b32.xlu0 %v691, 64
    %v1015 = vpop.permute.xlu0 %1014
    %1016 = vrot.lane.b32.xlu0 %v692, 64
    %v1017 = vpop.permute.xlu0 %1016
    %1018 = vrot.lane.b32.xlu0 %v693, 64
    %v1019 = vpop.permute.xlu0 %1018
    %1020 = vrot.lane.b32.xlu0 %v694, 64
    %v1021 = vpop.permute.xlu0 %1020
    %1022 = vrot.lane.b32.xlu0 %v695, 64
    %v1023 = vpop.permute.xlu0 %1022
    %1024 = vrot.lane.b32.xlu0 %v696, 64
    %v1025 = vpop.permute.xlu0 %1024
    %1026 = vrot.lane.b32.xlu0 %v697, 64
    %v1027 = vpop.permute.xlu0 %1026
    %1028 = vrot.lane.b32.xlu0 %v698, 64
    %v1029 = vpop.permute.xlu0 %1028
    %1030 = vrot.lane.b32.xlu0 %v699, 64
    %v1031 = vpop.permute.xlu0 %1030
    %1032 = vrot.lane.b32.xlu0 %v700, 64
    %v1033 = vpop.permute.xlu0 %1032
    %1034 = vrot.lane.b32.xlu0 %v701, 64
    %v1035 = vpop.permute.xlu0 %1034
    %1036 = vrot.lane.b32.xlu0 %v702, 64
    %v1037 = vpop.permute.xlu0 %1036
    %1038 = vrot.lane.b32.xlu0 %v703, 64
    %v1039 = vpop.permute.xlu0 %1038
    %1072 = vrot.lane.b32.xlu0 %v704, 96
    %v1073 = vpop.permute.xlu0 %1072
    %1074 = vrot.lane.b32.xlu0 %v705, 96
    %v1075 = vpop.permute.xlu0 %1074
    %1076 = vrot.lane.b32.xlu0 %v706, 96
    %v1077 = vpop.permute.xlu0 %1076
    %1078 = vrot.lane.b32.xlu0 %v707, 96
    %v1079 = vpop.permute.xlu0 %1078
    %1080 = vrot.lane.b32.xlu0 %v708, 96
    %v1081 = vpop.permute.xlu0 %1080
    %1082 = vrot.lane.b32.xlu0 %v709, 96
    %v1083 = vpop.permute.xlu0 %1082
    %1084 = vrot.lane.b32.xlu0 %v710, 96
    %v1085 = vpop.permute.xlu0 %1084
    %1086 = vrot.lane.b32.xlu0 %v711, 96
    %v1087 = vpop.permute.xlu0 %1086
    %1088 = vrot.lane.b32.xlu0 %v712, 96
    %v1089 = vpop.permute.xlu0 %1088
    %1090 = vrot.lane.b32.xlu0 %v713, 96
    %v1091 = vpop.permute.xlu0 %1090
    %1092 = vrot.lane.b32.xlu0 %v714, 96
    %v1093 = vpop.permute.xlu0 %1092
    %1094 = vrot.lane.b32.xlu0 %v715, 96
    %v1095 = vpop.permute.xlu0 %1094
    %1096 = vrot.lane.b32.xlu0 %v716, 96
    %v1097 = vpop.permute.xlu0 %1096
    %1098 = vrot.lane.b32.xlu0 %v717, 96
    %v1099 = vpop.permute.xlu0 %1098
    %1100 = vrot.lane.b32.xlu0 %v718, 96
    %v1101 = vpop.permute.xlu0 %1100
    %1102 = vrot.lane.b32.xlu0 %v719, 96
    %v1103 = vpop.permute.xlu0 %1102
    %v1120 = vsel %vm366, %v591, %v753
    %v1121 = vsel %vm366, %v592, %v755
    %v1122 = vsel %vm366, %v593, %v757
    %v1123 = vsel %vm366, %v594, %v759
    %v1124 = vsel %vm366, %v595, %v761
    %v1125 = vsel %vm366, %v596, %v763
    %v1126 = vsel %vm366, %v597, %v765
    %v1127 = vsel %vm366, %v598, %v767
    %v1128 = vsel %vm366, %v599, %v769
    %v1129 = vsel %vm366, %v600, %v771
    %v1130 = vsel %vm366, %v601, %v773
    %v1131 = vsel %vm366, %v602, %v775
    %v1132 = vsel %vm366, %v603, %v777
    %v1133 = vsel %vm366, %v604, %v779
    %v1134 = vsel %vm366, %v605, %v781
    %v1135 = vsel %vm366, %v606, %v783
    %vm1136 = vcmask 523264
    %v1137 = vsel %vm1136, %v1120, %v817
    %v1138 = vsel %vm1136, %v1121, %v819
    %v1139 = vsel %vm1136, %v1122, %v821
    %v1140 = vsel %vm1136, %v1123, %v823
    %v1141 = vsel %vm1136, %v1124, %v825
    %v1142 = vsel %vm1136, %v1125, %v827
    %v1143 = vsel %vm1136, %v1126, %v829
    %v1144 = vsel %vm1136, %v1127, %v831
    %v1145 = vsel %vm1136, %v1128, %v833
    %v1146 = vsel %vm1136, %v1129, %v835
    %v1147 = vsel %vm1136, %v1130, %v837
    %v1148 = vsel %vm1136, %v1131, %v839
    %v1149 = vsel %vm1136, %v1132, %v841
    %v1150 = vsel %vm1136, %v1133, %v843
    %v1151 = vsel %vm1136, %v1134, %v845
    %v1152 = vsel %vm1136, %v1135, %v847
    %vm1153 = vcmask 785408
    %v1154 = vsel %vm1153, %v1137, %v881
    %v1155 = vsel %vm1153, %v1138, %v883
    %v1156 = vsel %vm1153, %v1139, %v885
    %v1157 = vsel %vm1153, %v1140, %v887
    %v1158 = vsel %vm1153, %v1141, %v889
    %v1159 = vsel %vm1153, %v1142, %v891
    %v1160 = vsel %vm1153, %v1143, %v893
    %v1161 = vsel %vm1153, %v1144, %v895
    %v1162 = vsel %vm1153, %v1145, %v897
    %v1163 = vsel %vm1153, %v1146, %v899
    %v1164 = vsel %vm1153, %v1147, %v901
    %v1165 = vsel %vm1153, %v1148, %v903
    %v1166 = vsel %vm1153, %v1149, %v905
    %v1167 = vsel %vm1153, %v1150, %v907
    %v1168 = vsel %vm1153, %v1151, %v909
    %v1169 = vsel %vm1153, %v1152, %v911
    %v1170 = vsel %vm366, %v655, %v945
    %v1171 = vsel %vm366, %v656, %v947
    %v1172 = vsel %vm366, %v657, %v949
    %v1173 = vsel %vm366, %v658, %v951
    %v1174 = vsel %vm366, %v659, %v953
    %v1175 = vsel %vm366, %v660, %v955
    %v1176 = vsel %vm366, %v661, %v957
    %v1177 = vsel %vm366, %v662, %v959
    %v1178 = vsel %vm366, %v663, %v961
    %v1179 = vsel %vm366, %v664, %v963
    %v1180 = vsel %vm366, %v665, %v965
    %v1181 = vsel %vm366, %v666, %v967
    %v1182 = vsel %vm366, %v667, %v969
    %v1183 = vsel %vm366, %v668, %v971
    %v1184 = vsel %vm366, %v669, %v973
    %v1185 = vsel %vm366, %v670, %v975
    %v1186 = vsel %vm1136, %v1170, %v1009
    %v1187 = vsel %vm1136, %v1171, %v1011
    %v1188 = vsel %vm1136, %v1172, %v1013
    %v1189 = vsel %vm1136, %v1173, %v1015
    %v1190 = vsel %vm1136, %v1174, %v1017
    %v1191 = vsel %vm1136, %v1175, %v1019
    %v1192 = vsel %vm1136, %v1176, %v1021
    %v1193 = vsel %vm1136, %v1177, %v1023
    %v1194 = vsel %vm1136, %v1178, %v1025
    %v1195 = vsel %vm1136, %v1179, %v1027
    %v1196 = vsel %vm1136, %v1180, %v1029
    %v1197 = vsel %vm1136, %v1181, %v1031
    %v1198 = vsel %vm1136, %v1182, %v1033
    %v1199 = vsel %vm1136, %v1183, %v1035
    %v1200 = vsel %vm1136, %v1184, %v1037
    %v1201 = vsel %vm1136, %v1185, %v1039
    %v1202 = vsel %vm1153, %v1186, %v1073
    %v1203 = vsel %vm1153, %v1187, %v1075
    %v1204 = vsel %vm1153, %v1188, %v1077
    %v1205 = vsel %vm1153, %v1189, %v1079
    %v1206 = vsel %vm1153, %v1190, %v1081
    %v1207 = vsel %vm1153, %v1191, %v1083
    %v1208 = vsel %vm1153, %v1192, %v1085
    %v1209 = vsel %vm1153, %v1193, %v1087
    %v1210 = vsel %vm1153, %v1194, %v1089
    %v1211 = vsel %vm1153, %v1195, %v1091
    %v1212 = vsel %vm1153, %v1196, %v1093
    %v1213 = vsel %vm1153, %v1197, %v1095
    %v1214 = vsel %vm1153, %v1198, %v1097
    %v1215 = vsel %vm1153, %v1199, %v1099
    %v1216 = vsel %vm1153, %v1200, %v1101
    %v1217 = vsel %vm1153, %v1201, %v1103
    %v1218 = vpack.c.bf16 %v1155, %v1154
    %v1219 = vpack.c.bf16 %v1203, %v1202
    %v1220 = vpack.c.bf16 %v721, %v720
    %v1221 = vpack.c.bf16 %v1157, %v1156
    %v1222 = vpack.c.bf16 %v1205, %v1204
    %v1223 = vpack.c.bf16 %v723, %v722
    %v1224 = vpack.c.bf16 %v1159, %v1158
    %v1225 = vpack.c.bf16 %v1207, %v1206
    %v1226 = vpack.c.bf16 %v725, %v724
    %v1227 = vpack.c.bf16 %v1161, %v1160
    %v1228 = vpack.c.bf16 %v1209, %v1208
    %v1229 = vpack.c.bf16 %v727, %v726
    %v1230 = vpack.c.bf16 %v1163, %v1162
    %v1231 = vpack.c.bf16 %v1211, %v1210
    %v1232 = vpack.c.bf16 %v729, %v728
    %v1233 = vpack.c.bf16 %v1165, %v1164
    %v1234 = vpack.c.bf16 %v1213, %v1212
    %v1235 = vpack.c.bf16 %v731, %v730
    %v1236 = vpack.c.bf16 %v1167, %v1166
    %v1237 = vpack.c.bf16 %v1215, %v1214
    %v1238 = vpack.c.bf16 %v733, %v732
    %v1239 = vpack.c.bf16 %v1169, %v1168
    %v1240 = vpack.c.bf16 %v1217, %v1216
    %v1241 = vpack.c.bf16 %v735, %v734
    %v1242 = vld [vmem:[#allocation9] sm:$0xf]
    %v1243 = vld [vmem:[#allocation9 + $0x4] sm:$0xf]
    %v1244 = vld [vmem:[#allocation9 + $0x8] sm:$0xf]
    %v1245 = vld [vmem:[#allocation9 + $0xc] sm:$0xf]
    %v1246 = vld [vmem:[#allocation9 + $0x10] sm:$0xf]
    %v1247 = vld [vmem:[#allocation9 + $0x14] sm:$0xf]
    %v1248 = vld [vmem:[#allocation9 + $0x18] sm:$0xf]
    %v1249 = vld [vmem:[#allocation9 + $0x1c] sm:$0xf]
    %v1250 = vld [vmem:[#allocation9 + $0x20] sm:$0xf]
    %v1251 = vld [vmem:[#allocation9 + $0x24] sm:$0xf]
    %v1252 = vld [vmem:[#allocation9 + $0x28] sm:$0xf]
    %v1253 = vld [vmem:[#allocation9 + $0x2c] sm:$0xf]
    %v1254 = vld [vmem:[#allocation9 + $0x30] sm:$0xf]
    %v1255 = vld [vmem:[#allocation9 + $0x34] sm:$0xf]
    %v1256 = vld [vmem:[#allocation9 + $0x38] sm:$0xf]
    %v1257 = vld [vmem:[#allocation9 + $0x3c] sm:$0xf]
    %v1258 = vld [vmem:[#allocation9 + $0x40] sm:$0xf]
    %v1259 = vld [vmem:[#allocation9 + $0x44] sm:$0xf]
    %v1260 = vld [vmem:[#allocation9 + $0x48] sm:$0xf]
    %v1261 = vld [vmem:[#allocation9 + $0x4c] sm:$0xf]
    %v1262 = vld [vmem:[#allocation9 + $0x50] sm:$0xf]
    %v1263 = vld [vmem:[#allocation9 + $0x54] sm:$0xf]
    %v1264 = vld [vmem:[#allocation9 + $0x58] sm:$0xf]
    %v1265 = vld [vmem:[#allocation9 + $0x5c] sm:$0xf]
    %v1266 = vld [vmem:[#allocation9 + $0x60] sm:$0xf]
    %v1267 = vld [vmem:[#allocation9 + $0x64] sm:$0xf]
    %v1268 = vld [vmem:[#allocation9 + $0x68] sm:$0xf]
    %v1269 = vld [vmem:[#allocation9 + $0x6c] sm:$0xf]
    %v1270 = vld [vmem:[#allocation9 + $0x70] sm:$0xf]
    %v1271 = vld [vmem:[#allocation9 + $0x74] sm:$0xf]
    %v1272 = vld [vmem:[#allocation9 + $0x78] sm:$0xf]
    %v1273 = vld [vmem:[#allocation9 + $0x7c] sm:$0xf]
    %v1274 = vld [vmem:[#allocation9 + $0x80] sm:$0xf]
    %v1275 = vld [vmem:[#allocation9 + $0x84] sm:$0xf]
    %v1276 = vld [vmem:[#allocation9 + $0x88] sm:$0xf]
    %v1277 = vld [vmem:[#allocation9 + $0x8c] sm:$0xf]
    %v1314 = vunpack.c.l.b16 %v1242
    %v1315 = vunpack.c.l.b16 %v1243
    %v1316 = vunpack.c.l.b16 %v1244
    %v1317 = vunpack.c.l.b16 %v1245
    %v1318 = vunpack.c.l.b16 %v1246
    %v1319 = vunpack.c.l.b16 %v1247
    %v1320 = vunpack.c.l.b16 %v1248
    %v1321 = vunpack.c.l.b16 %v1249
    %v1322 = vunpack.c.l.b16 %v1250
    %v1323 = vunpack.c.l.b16 %v1251
    %v1324 = vunpack.c.l.b16 %v1252
    %v1325 = vunpack.c.l.b16 %v1253
    %v1326 = vunpack.c.l.b16 %v1254
    %v1327 = vunpack.c.l.b16 %v1255
    %v1328 = vunpack.c.l.b16 %v1256
    %v1329 = vunpack.c.l.b16 %v1257
    %v1330 = vunpack.c.l.b16 %v1258
    %v1331 = vunpack.c.l.b16 %v1259
    %v1332 = vunpack.c.l.b16 %v1260
    %v1333 = vunpack.c.l.b16 %v1261
    %v1334 = vunpack.c.l.b16 %v1262
    %v1335 = vunpack.c.l.b16 %v1263
    %v1336 = vunpack.c.l.b16 %v1264
    %v1337 = vunpack.c.l.b16 %v1265
    %v1338 = vunpack.c.l.b16 %v1266
    %v1339 = vunpack.c.l.b16 %v1267
    %v1340 = vunpack.c.l.b16 %v1268
    %v1341 = vunpack.c.l.b16 %v1269
    %v1342 = vunpack.c.l.b16 %v1270
    %v1343 = vunpack.c.l.b16 %v1271
    %v1344 = vunpack.c.l.b16 %v1272
    %v1345 = vunpack.c.l.b16 %v1273
    %v1346 = vunpack.c.l.b16 %v1274
    %v1347 = vunpack.c.l.b16 %v1275
    %v1348 = vunpack.c.l.b16 %v1276
    %v1349 = vunpack.c.l.b16 %v1277
    %v1350 = vpack.c.b16 %v1315, %v1314
    %v1351 = vpack.c.b16 %v1317, %v1316
    %v1352 = vpack.c.b16 %v1319, %v1318
    %v1353 = vpack.c.b16 %v1321, %v1320
    %v1354 = vpack.c.b16 %v1323, %v1322
    %v1355 = vpack.c.b16 %v1325, %v1324
    %v1356 = vpack.c.b16 %v1327, %v1326
    %v1357 = vpack.c.b16 %v1329, %v1328
    %v1358 = vpack.c.b16 %v1331, %v1330
    %v1359 = vpack.c.b16 %v1333, %v1332
    %v1360 = vpack.c.b16 %v1335, %v1334
    %v1361 = vpack.c.b16 %v1337, %v1336
    %v1362 = vpack.c.b16 %v1339, %v1338
    %v1363 = vpack.c.b16 %v1341, %v1340
    %v1364 = vpack.c.b16 %v1343, %v1342
    %v1365 = vpack.c.b16 %v1345, %v1344
    %v1366 = vpack.c.b16 %v1347, %v1346
    %v1367 = vpack.c.b16 %v1349, %v1348
    %v1387 = vsel %vm366, %v1220, 0
    %v1390 = vsel %vm366, %v1223, 0
    %v1393 = vsel %vm366, %v1226, 0
    %v1396 = vsel %vm366, %v1229, 0
    %v1399 = vsel %vm366, %v1232, 0
    %v1402 = vsel %vm366, %v1235, 0
    %v1405 = vsel %vm366, %v1238, 0
    %v1408 = vsel %vm366, %v1241, 0
    %1410 = vmatpush.bf16.msra.mxu0 %v1357
    %1411 = vmatpush.bf16.msra.mxu0 %v1356
    %1412 = vmatpush.bf16.msra.mxu0 %v1355
    %1413 = vmatpush.bf16.msra.mxu0 %v1354
    %1414 = vmatpush.bf16.msra.mxu0 %v1353
    %1415 = vmatpush.bf16.msra.mxu0 %v1352
    %1416 = vmatpush.bf16.msra.mxu0 %v1351
    %1417 = vmatpush.bf16.msra.mxu0 %v1350
    %1418 = vmatmul.bf16.gmra.mxu0 %v1218
    %v1419 = vpop.f32.mrf.mxu0
    %v1420 = vadd.f32 0.0, %v1419
    %v1421 = vpop.f32.mrf.mxu0
    %v1422 = vadd.f32 0.0, %v1421
    %1423 = vmatmul.bf16.gmra.mxu0 %v1221
    %v1424 = vpop.f32.mrf.mxu0
    %v1425 = vadd.f32 0.0, %v1424
    %v1426 = vpop.f32.mrf.mxu0
    %v1427 = vadd.f32 0.0, %v1426
    %1428 = vmatmul.bf16.gmra.mxu0 %v1224
    %v1429 = vpop.f32.mrf.mxu0
    %v1430 = vadd.f32 0.0, %v1429
    %v1431 = vpop.f32.mrf.mxu0
    %v1432 = vadd.f32 0.0, %v1431
    %1433 = vmatmul.bf16.gmra.mxu0 %v1227
    %v1434 = vpop.f32.mrf.mxu0
    %v1435 = vadd.f32 0.0, %v1434
    %v1436 = vpop.f32.mrf.mxu0
    %v1437 = vadd.f32 0.0, %v1436
    %1438 = vmatmul.bf16.gmra.mxu0 %v1230
    %v1439 = vpop.f32.mrf.mxu0
    %v1440 = vadd.f32 0.0, %v1439
    %v1441 = vpop.f32.mrf.mxu0
    %v1442 = vadd.f32 0.0, %v1441
    %1443 = vmatmul.bf16.gmra.mxu0 %v1233
    %v1444 = vpop.f32.mrf.mxu0
    %v1445 = vadd.f32 0.0, %v1444
    %v1446 = vpop.f32.mrf.mxu0
    %v1447 = vadd.f32 0.0, %v1446
    %1448 = vmatmul.bf16.gmra.mxu0 %v1236
    %v1449 = vpop.f32.mrf.mxu0
    %v1450 = vadd.f32 0.0, %v1449
    %v1451 = vpop.f32.mrf.mxu0
    %v1452 = vadd.f32 0.0, %v1451
    %1453 = vmatmul.bf16.gmra.mxu0 %v1239
    %v1454 = vpop.f32.mrf.mxu0
    %v1455 = vadd.f32 0.0, %v1454
    %v1456 = vpop.f32.mrf.mxu0
    %v1457 = vadd.f32 0.0, %v1456
    %1458 = vdwg.mxu0
    %1459 = vmatpush.bf16.msra.mxu0 %v1365
    %1460 = vmatpush.bf16.msra.mxu0 %v1364
    %1461 = vmatpush.bf16.msra.mxu0 %v1363
    %1462 = vmatpush.bf16.msra.mxu0 %v1362
    %1463 = vmatpush.bf16.msra.mxu0 %v1361
    %1464 = vmatpush.bf16.msra.mxu0 %v1360
    %1465 = vmatpush.bf16.msra.mxu0 %v1359
    %1466 = vmatpush.bf16.msra.mxu0 %v1358
    %1467 = vmatmul.bf16.gmra.mxu0 %v1219
    %v1468 = vpop.f32.mrf.mxu0
    %v1469 = vadd.f32 %v1420, %v1468
    %v1470 = vpop.f32.mrf.mxu0
    %v1471 = vadd.f32 %v1422, %v1470
    %1472 = vmatmul.bf16.gmra.mxu0 %v1222
    %v1473 = vpop.f32.mrf.mxu0
    %v1474 = vadd.f32 %v1425, %v1473
    %v1475 = vpop.f32.mrf.mxu0
    %v1476 = vadd.f32 %v1427, %v1475
    %1477 = vmatmul.bf16.gmra.mxu0 %v1225
    %v1478 = vpop.f32.mrf.mxu0
    %v1479 = vadd.f32 %v1430, %v1478
    %v1480 = vpop.f32.mrf.mxu0
    %v1481 = vadd.f32 %v1432, %v1480
    %1482 = vmatmul.bf16.gmra.mxu0 %v1228
    %v1483 = vpop.f32.mrf.mxu0
    %v1484 = vadd.f32 %v1435, %v1483
    %v1485 = vpop.f32.mrf.mxu0
    %v1486 = vadd.f32 %v1437, %v1485
    %1487 = vmatmul.bf16.gmra.mxu0 %v1231
    %v1488 = vpop.f32.mrf.mxu0
    %v1489 = vadd.f32 %v1440, %v1488
    %v1490 = vpop.f32.mrf.mxu0
    %v1491 = vadd.f32 %v1442, %v1490
    %1492 = vmatmul.bf16.gmra.mxu0 %v1234
    %v1493 = vpop.f32.mrf.mxu0
    %v1494 = vadd.f32 %v1445, %v1493
    %v1495 = vpop.f32.mrf.mxu0
    %v1496 = vadd.f32 %v1447, %v1495
    %1497 = vmatmul.bf16.gmra.mxu0 %v1237
    %v1498 = vpop.f32.mrf.mxu0
    %v1499 = vadd.f32 %v1450, %v1498
    %v1500 = vpop.f32.mrf.mxu0
    %v1501 = vadd.f32 %v1452, %v1500
    %1502 = vmatmul.bf16.gmra.mxu0 %v1240
    %v1503 = vpop.f32.mrf.mxu0
    %v1504 = vadd.f32 %v1455, %v1503
    %v1505 = vpop.f32.mrf.mxu0
    %v1506 = vadd.f32 %v1457, %v1505
    %1507 = vdwg.mxu0
    %1508 = vmatpush.bf16.msra.mxu0 0
    %1509 = vmatpush.bf16.msra.mxu0 0
    %1510 = vmatpush.bf16.msra.mxu0 0
    %1511 = vmatpush.bf16.msra.mxu0 0
    %1512 = vmatpush.bf16.msra.mxu0 0
    %1513 = vmatpush.bf16.msra.mxu0 0
    %1514 = vmatpush.bf16.msra.mxu0 %v1367
    %1515 = vmatpush.bf16.msra.mxu0 %v1366
    %1516 = vmatmul.bf16.gmra.mxu0 %v1387
    %v1517 = vpop.f32.mrf.mxu0
    %v1518 = vadd.f32 %v1469, %v1517
    %v1519 = vpop.f32.mrf.mxu0
    %v1520 = vadd.f32 %v1471, %v1519
    %1521 = vmatmul.bf16.gmra.mxu0 %v1390
    %v1522 = vpop.f32.mrf.mxu0
    %v1523 = vadd.f32 %v1474, %v1522
    %v1524 = vpop.f32.mrf.mxu0
    %v1525 = vadd.f32 %v1476, %v1524
    %1526 = vmatmul.bf16.gmra.mxu0 %v1393
    %v1527 = vpop.f32.mrf.mxu0
    %v1528 = vadd.f32 %v1479, %v1527
    %v1529 = vpop.f32.mrf.mxu0
    %v1530 = vadd.f32 %v1481, %v1529
    %1531 = vmatmul.bf16.gmra.mxu0 %v1396
    %v1532 = vpop.f32.mrf.mxu0
    %v1533 = vadd.f32 %v1484, %v1532
    %v1534 = vpop.f32.mrf.mxu0
    %v1535 = vadd.f32 %v1486, %v1534
    %1536 = vmatmul.bf16.gmra.mxu0 %v1399
    %v1537 = vpop.f32.mrf.mxu0
    %v1538 = vadd.f32 %v1489, %v1537
    %v1539 = vpop.f32.mrf.mxu0
    %v1540 = vadd.f32 %v1491, %v1539
    %1541 = vmatmul.bf16.gmra.mxu0 %v1402
    %v1542 = vpop.f32.mrf.mxu0
    %v1543 = vadd.f32 %v1494, %v1542
    %v1544 = vpop.f32.mrf.mxu0
    %v1545 = vadd.f32 %v1496, %v1544
    %1546 = vmatmul.bf16.gmra.mxu0 %v1405
    %v1547 = vpop.f32.mrf.mxu0
    %v1548 = vadd.f32 %v1499, %v1547
    %v1549 = vpop.f32.mrf.mxu0
    %v1550 = vadd.f32 %v1501, %v1549
    %1551 = vmatmul.bf16.gmra.mxu0 %v1408
    %v1552 = vpop.f32.mrf.mxu0
    %v1553 = vadd.f32 %v1504, %v1552
    %v1554 = vpop.f32.mrf.mxu0
    %v1555 = vadd.f32 %v1506, %v1554
    %1556 = vdwg.mxu0
    %1557 = vst [vmem:[#allocation11] sm:$0xff] %v1518
    %1558 = vst [vmem:[#allocation11 + $0x8] sm:$0xff] %v1520
    %1559 = vst [vmem:[#allocation11 + $0x10] sm:$0xff] %v1523
    %1560 = vst [vmem:[#allocation11 + $0x18] sm:$0xff] %v1525
    %1561 = vst [vmem:[#allocation11 + $0x20] sm:$0xff] %v1528
    %1562 = vst [vmem:[#allocation11 + $0x28] sm:$0xff] %v1530
    %1563 = vst [vmem:[#allocation11 + $0x30] sm:$0xff] %v1533
    %1564 = vst [vmem:[#allocation11 + $0x38] sm:$0xff] %v1535
    %1565 = vst [vmem:[#allocation11 + $0x40] sm:$0xff] %v1538
    %1566 = vst [vmem:[#allocation11 + $0x48] sm:$0xff] %v1540
    %1567 = vst [vmem:[#allocation11 + $0x50] sm:$0xff] %v1543
    %1568 = vst [vmem:[#allocation11 + $0x58] sm:$0xff] %v1545
    %1569 = vst [vmem:[#allocation11 + $0x60] sm:$0xff] %v1548
    %1570 = vst [vmem:[#allocation11 + $0x68] sm:$0xff] %v1550
    %1571 = vst [vmem:[#allocation11 + $0x70] sm:$0xff] %v1553
    %1572 = vst [vmem:[#allocation11 + $0x78] sm:$0xff] %v1555
    // Predicated region
    $region46: #{tpu_custom_call.1} parent=1 // pred_check
      _
    $region47: #{tpu_custom_call.1} parent=1 // pred_check_branch
      %1574 = sbr.rel (0) target = $region49
    $region48: #{tpu_custom_call.1} parent=1 // pred_region
      %1576 = vsyncadd [#allocation5], 0
      %s1577 = sshll.u32 [#allocation11], 4
      %s1578 = int_to_ptr.vmem [resolvable:$true] %s1577
      %s1579 = sshll.u32 %s7, 4
      %s1580 = int_to_ptr.hbm [resolvable:$true] %s1579
      %1585 = dma.vmem_to_hbm [thread:$0]  %s1578, 2048, %s1580, [#allocation5], 128, 128, 8
    $region49: #{tpu_custom_call.1} parent=1 // pred_fallthru
      _
    // Predicated region
    $region50: #{tpu_custom_call.1} parent=1 // pred_check
      _
    $region51: #{tpu_custom_call.1} parent=1 // pred_check_branch
      %1587 = sbr.rel (0) target = $region53
    $region52: #{tpu_custom_call.1} parent=1 // pred_region
      %1589 = dma.done [#allocation5], 2048
    $region53: #{tpu_custom_call.1} parent=1 // pred_fallthru
      _
    %1590 = vsyncpa [#allocation4], 1
    %1591 = vsyncpa [#allocation7], 1
    %1592 = vsyncpa [#allocation10], 1
    %1593 = vsyncpa [#allocation5], 1

</llo_original>
